<compile_context>
chip_gen: v7x
topology: tpu7x:2x2x1
jax: 0.10.0
libtpu: 0.0.40
codegen_flags: <defaults>
</compile_context>

<pallas_src>
import numpy as np

import jax
import jax.numpy as jnp
from jax.experimental import pallas as pl
from jax.experimental.pallas import tpu as pltpu

# ----------------------------------------------------------------------------
# Synthetic skeleton definition (KCS_util equivalent).
# H36M-like 16-joint skeleton, 15 bones, 5 partitions of 4 bones each.
# TODO(synk): KCS_util (joints_ordering / extend) is not part of the spec; we
# assume a complete 16-joint skeleton, i.e. extend() is the identity.
# ----------------------------------------------------------------------------
NUM_JOINTS = 16
BONES = [
    (0, 1), (1, 2), (2, 3),          # right leg      -> bones 0,1,2
    (0, 4), (4, 5), (5, 6),          # left leg       -> bones 3,4,5
    (0, 7), (7, 8), (8, 9),          # spine / head   -> bones 6,7,8
    (8, 10), (10, 11), (11, 12),     # left arm       -> bones 9,10,11
    (8, 13), (13, 14), (14, 15),     # right arm      -> bones 12,13,14
]
PARTITIONS = {
    "ll":    [3, 4, 5, 6],
    "rl":    [0, 1, 2, 6],
    "torso": [6, 7, 8, 12],
    "lh":    [9, 10, 11, 8],
    "rh":    [12, 13, 14, 8],
}
PART_ORDER = ["ll", "rl", "torso", "lh", "rh"]
NUM_PARTS = 5
NB = 4                                  # bones per partition
FEATURES = NB * NB                      # 16 = in_features of each KCSi MLP
TOTAL_FEATURES = NUM_PARTS * FEATURES   # 80  (fused KCS feature rows)
CHANNEL = 32
MID_CHANNEL = 32
TOTAL_CHANNEL = NUM_PARTS * CHANNEL     # 160 (fused hidden rows)
OUT_PAD = 8                             # output slab rows; rows 0..4 are valid
NEG_SLOPE = 0.01                        # nn.LeakyReLU() default
LANE = 128
MAX_TN = 2048                           # batch-tile cap (lanes)
MIN_SPLIT = 1024                        # force >=2 grid steps above this (v7x 2 TCs)


def _round_up(x, m):
    return ((x + m - 1) // m) * m


def _cdiv(a, b):
    return (a + b - 1) // b


# ----------------------------------------------------------------------------
# Merged KCS selection constant: a single (160, J) matrix with entries in
# {-1, 0, +1} such that, for coords xc of shape (J, N) per coordinate c:
#     lr      = am @ xc                      # (160, N)
#     g_c     = lr[:80] * lr[80:]            # (80, N)
#     g[col,n]= sum_c g_c[col, n] = <bone_{p,i}(n), bone_{p,j}(n)>
# with col = 16*p + 4*i + j (identical to the PyTorch .view(N, -1) flattening).
# ----------------------------------------------------------------------------
def _merged_selection_matrix():
    s = np.zeros((NUM_JOINTS, NUM_PARTS * NB), np.float32)           # joints -> bones
    for p, name in enumerate(PART_ORDER):
        for i, bone in enumerate(PARTITIONS[name]):
            parent, child = BONES[bone]
            s[child, p * NB + i] += 1.0
            s[parent, p * NB + i] -= 1.0
    e_i = np.zeros((NUM_PARTS * NB, TOTAL_FEATURES), np.float32)     # bones -> (i of pair)
    e_j = np.zeros((NUM_PARTS * NB, TOTAL_FEATURES), np.float32)     # bones -> (j of pair)
    for p in range(NUM_PARTS):
        for i in range(NB):
            for j in range(NB):
                col = p * FEATURES + i * NB + j
                e_i[p * NB + i, col] = 1.0
                e_j[p * NB + j, col] = 1.0
    ai_t = (s @ e_i).T                                               # (80, J)
    aj_t = (s @ e_j).T                                               # (80, J)
    am = np.concatenate([ai_t, aj_t], axis=0)                        # (160, J)
    return jnp.asarray(am, dtype=jnp.bfloat16)                       # +/-1 exact in bf16


# ----------------------------------------------------------------------------
# Pallas kernel. One batch tile of tn samples (on the lane axis).
#   coords_ref : (3, J, tn)  bf16
#   am_ref     : (160, J)    bf16   merged KCS selection matrix
#   wXt_ref    : transposed block-diagonal fused weights, bf16
#   bX_ref     : (160, 1)    f32    fused biases (lane-broadcast add)
#   wpt_ref    : (8, 160)    bf16   prediction heads (rows 0..4)
#   out_ref    : (8, tn)     f32    sigmoid scores, rows 0..4 valid
# ----------------------------------------------------------------------------
def _disc_kernel(coords_ref, am_ref, w1_ref, b1_ref, w2_ref, b2_ref,
                 w3_ref, b3_ref, wm_ref, bm_ref, wp_ref, out_ref):
    f32 = jnp.float32
    bf16 = jnp.bfloat16

    def act(v):                                     # LeakyReLU(0.01), f32 on VPU
        return jnp.where(v >= 0, v, NEG_SLOPE * v)

    am = am_ref[...]                                # (160, J) bf16

    # KCS layer, all 5 partitions fused: one bf16 dot per coordinate (3 total),
    # f32 elementwise product + accumulate. g: (80, tn) f32.
    g = None
    for c in range(3):                              # unrolled at trace time
        xc = coords_ref[c]                          # (J, tn) bf16
        lr = jnp.dot(am, xc, preferred_element_type=f32)      # (160, tn) f32
        term = lr[:TOTAL_FEATURES] * lr[TOTAL_FEATURES:]      # sublane-80 split: tile-aligned
        g = term if g is None else g + term

    # Five KCSi_discriminator MLPs fused via transposed block-diagonal weights.
    # bf16 operands, f32 accumulation, f32 bias/residual/activation math.
    r1 = act(jnp.dot(w1_ref[...], g.astype(bf16),
                     preferred_element_type=f32) + b1_ref[...])
    r2 = act(jnp.dot(w2_ref[...], r1.astype(bf16),
                     preferred_element_type=f32) + b2_ref[...])
    r3 = act(jnp.dot(w3_ref[...], r2.astype(bf16),
                     preferred_element_type=f32) + b3_ref[...] + r1)
    m1 = act(jnp.dot(wm_ref[...], r3.astype(bf16),
                     preferred_element_type=f32) + bm_ref[...])
    z = jnp.dot(wp_ref[...], m1.astype(bf16), preferred_element_type=f32)  # (8, tn)
    out_ref[...] = jax.nn.sigmoid(z).astype(out_ref.dtype)


# ----------------------------------------------------------------------------
# Wrapper.
# ----------------------------------------------------------------------------
@jax.jit
def pos3d_discriminator(inputs_3d, packed_params):
    """inputs_3d: (N, J, 3) f32 -> (N, 5) sigmoid scores [ll, rl, torso, lh, rh]."""
    (am, w1t, b1, w2t, b2, w3t, b3, wmt, bm, wpt) = packed_params
    n = inputs_3d.shape[0]

    # Adaptive batch tiling: lane-multiple tiles, capped at MAX_TN, minimal padding,
    # and >= 2 grid steps once there is enough work (keeps both v7x TCs busy).
    n128 = _round_up(max(n, 1), LANE)
    steps = _cdiv(n128, MAX_TN)
    if n128 >= MIN_SPLIT:
        steps = max(steps, 2)
    tn = _round_up(_cdiv(n128, steps), LANE)
    n_pad = tn * steps

    # (N, J, 3) -> (3, J, N): coordinate-major, batch on the lane axis.
    # Root-centering is folded away (bone vectors are translation invariant);
    # the pure-JAX reference applies it explicitly and matches.
    coords = jnp.transpose(inputs_3d.astype(jnp.float32), (2, 1, 0))
    if n_pad != n:
        coords = jnp.pad(coords, ((0, 0), (0, 0), (0, n_pad - n)))
    coords = coords.astype(jnp.bfloat16)            # halves input DMA; MXU operand dtype

    def const_spec(x):                              # resident weights: DMA'd once
        zeros = (0,) * x.ndim
        return pl.BlockSpec(tuple(x.shape), lambda i: zeros)

    out = pl.pallas_call(
        _disc_kernel,
        out_shape=jax.ShapeDtypeStruct((OUT_PAD, n_pad), jnp.float32),
        grid_spec=pltpu.PrefetchScalarGridSpec(
            num_scalar_prefetch=0,
            grid=(steps,),
            in_specs=[
                pl.BlockSpec((3, NUM_JOINTS, tn), lambda i: (0, 0, i)),
                const_spec(am),
                const_spec(w1t), const_spec(b1),
                const_spec(w2t), const_spec(b2),
                const_spec(w3t), const_spec(b3),
                const_spec(wmt), const_spec(bm),
                const_spec(wpt),
            ],
            out_specs=pl.BlockSpec((OUT_PAD, tn), lambda i: (0, i)),
        ),
        compiler_params=pltpu.CompilerParams(
            dimension_semantics=("parallel",)),
    )(coords, am, w1t, b1, w2t, b2, w3t, b3, wmt, bm, wpt)

    return out[:NUM_PARTS, :n].T                    # (N, 5)


# ----------------------------------------------------------------------------
# Parameters: 5 independent KCSi discriminators (as in the PyTorch module), plus
# packing into the fused transposed block-diagonal bf16 weights the kernel uses.
# Weights are snapped to bf16-representable values so the stored parameters are
# identical for the kernel (bf16) and the f32 reference.
# ----------------------------------------------------------------------------
def init_params(key):
    def snap(x):
        return x.astype(jnp.bfloat16).astype(jnp.float32)

    def lin(k, fan_in, fan_out):
        bound = 1.0 / float(np.sqrt(fan_in))
        kw, kb = jax.random.split(k)
        w = snap(jax.random.uniform(kw, (NUM_PARTS, fan_in, fan_out), jnp.float32, -bound, bound))
        b = jax.random.uniform(kb, (NUM_PARTS, 1, fan_out), jnp.float32, -bound, bound)
        return w, b

    k1, k2, k3, k4, k5 = jax.random.split(key, 5)
    w1, b1 = lin(k1, FEATURES, CHANNEL)
    w2, b2 = lin(k2, CHANNEL, CHANNEL)
    w3, b3 = lin(k3, CHANNEL, CHANNEL)
    wm, bm = lin(k4, CHANNEL, MID_CHANNEL)
    bound = 1.0 / float(np.sqrt(MID_CHANNEL))
    wp = snap(jax.random.uniform(k5, (NUM_PARTS, MID_CHANNEL, 1), jnp.float32, -bound, bound))
    return (w1, b1, w2, b2, w3, b3, wm, bm, wp)


def pack_params(params):
    w1, b1, w2, b2, w3, b3, wm, bm, wp = params

    def block_diag_t(w):                            # (5, fi, fo) -> (5*fo, 5*fi) bf16
        fi, fo = w.shape[1], w.shape[2]
        out = jnp.zeros((NUM_PARTS * fo, NUM_PARTS * fi), jnp.float32)
        for p in range(NUM_PARTS):
            out = out.at[p * fo:(p + 1) * fo, p * fi:(p + 1) * fi].set(w[p].T)
        return out.astype(jnp.bfloat16)

    def bias_col(b):                                # (5, 1, fo) -> (5*fo, 1) f32
        return b.reshape(-1, 1)

    wpt = jnp.zeros((OUT_PAD, TOTAL_CHANNEL), jnp.float32)
    for p in range(NUM_PARTS):
        wpt = wpt.at[p, p * MID_CHANNEL:(p + 1) * MID_CHANNEL].set(wp[p, :, 0])
    wpt = wpt.astype(jnp.bfloat16)

    am = _merged_selection_matrix()
    return (am,
            block_diag_t(w1), bias_col(b1),
            block_diag_t(w2), bias_col(b2),
            block_diag_t(w3), bias_col(b3),
            block_diag_t(wm), bias_col(bm),
            wpt)


# ----------------------------------------------------------------------------
# Pure-JAX reference, faithful to the PyTorch forward (extend -> center ->
# bone vectors -> per-partition KCS Gram -> 5 independent KCSi MLPs -> concat).
# With bf16_matmul_operands=True it emulates the kernel's MXU numerics
# (bf16 operands, f32 accumulation) for a tight equivalence check.
# ----------------------------------------------------------------------------
def reference(inputs_3d, params, bf16_matmul_operands=False):
    w1, b1, w2, b2, w3, b3, wm, bm, wp = params
    act = lambda v: jnp.where(v >= 0, v, NEG_SLOPE * v)
    if bf16_matmul_operands:
        q = lambda v: v.astype(jnp.bfloat16).astype(jnp.float32)
    else:
        q = lambda v: v
    dot = lambda a, b: jnp.dot(q(a), q(b), precision=jax.lax.Precision.HIGHEST)

    ext = inputs_3d                                 # extend(): identity (complete skeleton)
    ext = ext - ext[:, 0:1, :]                      # center on the root joint
    bv = jnp.stack([ext[:, c, :] - ext[:, p, :] for (p, c) in BONES], axis=1)  # (N, B, 3)

    outs = []
    for p, name in enumerate(PART_ORDER):
        b = bv[:, np.array(PARTITIONS[name]), :]                  # (N, 4, 3)
        psi = (b[:, :, None, :] * b[:, None, :, :]).sum(-1)       # B @ B^T, (N, 4, 4)
        x = psi.reshape(psi.shape[0], -1)                         # == .view(N, -1)
        r1 = act(dot(x, w1[p]) + b1[p])
        r2 = act(dot(r1, w2[p]) + b2[p])
        r3 = act(dot(r2, w3[p]) + b3[p] + r1)
        m1 = act(dot(r3, wm[p]) + bm[p])
        outs.append(jax.nn.sigmoid(dot(m1, wp[p])))
    return jnp.concatenate(outs, axis=1)            # (N, 5)


if __name__ == "__main__":
    key = jax.random.PRNGKey(0)
    kx, kp = jax.random.split(key)
    N = 8
    inputs_3d = jax.random.normal(kx, (N, NUM_JOINTS, 3), dtype=jnp.float32)
    # Snap inputs to bf16-representable values so the kernel's bf16 coord cast is exact.
    inputs_3d = inputs_3d.astype(jnp.bfloat16).astype(jnp.float32)

    params = init_params(kp)
    packed = pack_params(params)

    out = pos3d_discriminator(inputs_3d, packed)
    out = jax.block_until_ready(out)
    assert out.shape == (N, NUM_PARTS), out.shape

    # (1) Tight check vs. a reference that emulates the kernel's MXU numerics
    #     (bf16 operands, f32 accumulation): proves the fused/transposed wiring.
    ref_bf16 = reference(inputs_3d, params, bf16_matmul_operands=True)
    assert jnp.allclose(out, ref_bf16, atol=1e-3, rtol=1e-3), \
        float(jnp.max(jnp.abs(out - ref_bf16)))

    # (2) Looser check vs. the pure-f32 forward (faithful PyTorch semantics):
    #     bf16 MXU operands (per perf review) deviate from f32 at the ~1e-3 level
    #     on these sigmoid outputs.
    ref_f32 = reference(inputs_3d, params, bf16_matmul_operands=False)
    assert jnp.allclose(out, ref_f32, atol=1e-2, rtol=1e-2), \
        float(jnp.max(jnp.abs(out - ref_f32)))

    print("KERNEL_OK")
</pallas_src>

<mosaic_0001>
module attributes {stable_mosaic.version = 11 : i64} {
  func.func @_disc_kernel(%arg0: i32, %arg1: memref<3x16x128xbf16, #tpu.memory_space<vmem>>, %arg2: memref<160x16xbf16, #tpu.memory_space<vmem>>, %arg3: memref<160x80xbf16, #tpu.memory_space<vmem>>, %arg4: memref<160x1xf32, #tpu.memory_space<vmem>>, %arg5: memref<160x160xbf16, #tpu.memory_space<vmem>>, %arg6: memref<160x1xf32, #tpu.memory_space<vmem>>, %arg7: memref<160x160xbf16, #tpu.memory_space<vmem>>, %arg8: memref<160x1xf32, #tpu.memory_space<vmem>>, %arg9: memref<160x160xbf16, #tpu.memory_space<vmem>>, %arg10: memref<160x1xf32, #tpu.memory_space<vmem>>, %arg11: memref<8x160xbf16, #tpu.memory_space<vmem>>, %arg12: memref<8x128xf32, #tpu.memory_space<vmem>>) attributes {dimension_semantics = [#tpu.dimension_semantics<parallel>], iteration_bounds = array<i64: 1>, scalar_prefetch = 0 : i64, scratch_operands = 0 : i64, tpu.core_type = #tpu.core_type<tc>, window_params = [{transform_indices = @transform_0, window_bounds = array<i64: 3, 16, 128>}, {pipeline_mode = #tpu.pipeline_mode<synchronous>, transform_indices = @transform_1, window_bounds = array<i64: 160, 16>}, {pipeline_mode = #tpu.pipeline_mode<synchronous>, transform_indices = @transform_2, window_bounds = array<i64: 160, 80>}, {pipeline_mode = #tpu.pipeline_mode<synchronous>, transform_indices = @transform_3, window_bounds = array<i64: 160, 1>}, {pipeline_mode = #tpu.pipeline_mode<synchronous>, transform_indices = @transform_4, window_bounds = array<i64: 160, 160>}, {pipeline_mode = #tpu.pipeline_mode<synchronous>, transform_indices = @transform_5, window_bounds = array<i64: 160, 1>}, {pipeline_mode = #tpu.pipeline_mode<synchronous>, transform_indices = @transform_6, window_bounds = array<i64: 160, 160>}, {pipeline_mode = #tpu.pipeline_mode<synchronous>, transform_indices = @transform_7, window_bounds = array<i64: 160, 1>}, {pipeline_mode = #tpu.pipeline_mode<synchronous>, transform_indices = @transform_8, window_bounds = array<i64: 160, 160>}, {pipeline_mode = #tpu.pipeline_mode<synchronous>, transform_indices = @transform_9, window_bounds = array<i64: 160, 1>}, {pipeline_mode = #tpu.pipeline_mode<synchronous>, transform_indices = @transform_10, window_bounds = array<i64: 8, 160>}, {transform_indices = @transform_11, window_bounds = array<i64: 8, 128>}]} {
    %c0 = arith.constant 0 : index
    %c0_0 = arith.constant 0 : index
    %0 = vector.load %arg2[%c0, %c0_0] : memref<160x16xbf16, #tpu.memory_space<vmem>>, vector<160x16xbf16>
    %c0_1 = arith.constant 0 : index
    %c0_2 = arith.constant 0 : index
    %c0_3 = arith.constant 0 : index
    %1 = vector.load %arg1[%c0_1, %c0_2, %c0_3] : memref<3x16x128xbf16, #tpu.memory_space<vmem>>, vector<1x16x128xbf16>
    %2 = vector.shape_cast %1 : vector<1x16x128xbf16> to vector<16x128xbf16>
    %cst = arith.constant dense<0.000000e+00> : vector<160x128xf32>
    %3 = tpu.matmul %0, %2, %cst {dimension_numbers = #tpu.dot_dimension_numbers<[1], [0], [0], [1], [0, 0, 1, 1], [], []>} : vector<160x16xbf16>, vector<16x128xbf16>, vector<160x128xf32> -> vector<160x128xf32>
    %4 = vector.extract_strided_slice %3 {offsets = [0, 0], sizes = [80, 128], strides = [1, 1]} : vector<160x128xf32> to vector<80x128xf32>
    %5 = vector.extract_strided_slice %3 {offsets = [80, 0], sizes = [80, 128], strides = [1, 1]} : vector<160x128xf32> to vector<80x128xf32>
    %6 = arith.mulf %4, %5 : vector<80x128xf32>
    %c1 = arith.constant 1 : index
    %c0_4 = arith.constant 0 : index
    %c0_5 = arith.constant 0 : index
    %7 = vector.load %arg1[%c1, %c0_4, %c0_5] : memref<3x16x128xbf16, #tpu.memory_space<vmem>>, vector<1x16x128xbf16>
    %8 = vector.shape_cast %7 : vector<1x16x128xbf16> to vector<16x128xbf16>
    %cst_6 = arith.constant dense<0.000000e+00> : vector<160x128xf32>
    %9 = tpu.matmul %0, %8, %cst_6 {dimension_numbers = #tpu.dot_dimension_numbers<[1], [0], [0], [1], [0, 0, 1, 1], [], []>} : vector<160x16xbf16>, vector<16x128xbf16>, vector<160x128xf32> -> vector<160x128xf32>
    %10 = vector.extract_strided_slice %9 {offsets = [0, 0], sizes = [80, 128], strides = [1, 1]} : vector<160x128xf32> to vector<80x128xf32>
    %11 = vector.extract_strided_slice %9 {offsets = [80, 0], sizes = [80, 128], strides = [1, 1]} : vector<160x128xf32> to vector<80x128xf32>
    %12 = arith.mulf %10, %11 : vector<80x128xf32>
    %13 = arith.addf %6, %12 : vector<80x128xf32>
    %c2 = arith.constant 2 : index
    %c0_7 = arith.constant 0 : index
    %c0_8 = arith.constant 0 : index
    %14 = vector.load %arg1[%c2, %c0_7, %c0_8] : memref<3x16x128xbf16, #tpu.memory_space<vmem>>, vector<1x16x128xbf16>
    %15 = vector.shape_cast %14 : vector<1x16x128xbf16> to vector<16x128xbf16>
    %cst_9 = arith.constant dense<0.000000e+00> : vector<160x128xf32>
    %16 = tpu.matmul %0, %15, %cst_9 {dimension_numbers = #tpu.dot_dimension_numbers<[1], [0], [0], [1], [0, 0, 1, 1], [], []>} : vector<160x16xbf16>, vector<16x128xbf16>, vector<160x128xf32> -> vector<160x128xf32>
    %17 = vector.extract_strided_slice %16 {offsets = [0, 0], sizes = [80, 128], strides = [1, 1]} : vector<160x128xf32> to vector<80x128xf32>
    %18 = vector.extract_strided_slice %16 {offsets = [80, 0], sizes = [80, 128], strides = [1, 1]} : vector<160x128xf32> to vector<80x128xf32>
    %19 = arith.mulf %17, %18 : vector<80x128xf32>
    %20 = arith.addf %13, %19 : vector<80x128xf32>
    %c0_10 = arith.constant 0 : index
    %c0_11 = arith.constant 0 : index
    %21 = vector.load %arg3[%c0_10, %c0_11] : memref<160x80xbf16, #tpu.memory_space<vmem>>, vector<160x80xbf16>
    %22 = arith.truncf %20 : vector<80x128xf32> to vector<80x128xbf16>
    %cst_12 = arith.constant dense<0.000000e+00> : vector<160x128xf32>
    %23 = tpu.matmul %21, %22, %cst_12 {dimension_numbers = #tpu.dot_dimension_numbers<[1], [0], [0], [1], [0, 0, 1, 1], [], []>} : vector<160x80xbf16>, vector<80x128xbf16>, vector<160x128xf32> -> vector<160x128xf32>
    %c0_13 = arith.constant 0 : index
    %c0_14 = arith.constant 0 : index
    %24 = vector.load %arg4[%c0_13, %c0_14] : memref<160x1xf32, #tpu.memory_space<vmem>>, vector<160x1xf32>
    %25 = vector.broadcast %24 : vector<160x1xf32> to vector<160x128xf32>
    %26 = arith.addf %23, %25 : vector<160x128xf32>
    %cst_15 = arith.constant 0.000000e+00 : f32
    %27 = vector.broadcast %cst_15 : f32 to vector<160x128xf32>
    %28 = arith.cmpf oge, %26, %27 : vector<160x128xf32>
    %cst_16 = arith.constant 0.00999999977 : f32
    %29 = vector.broadcast %cst_16 : f32 to vector<160x128xf32>
    %30 = arith.mulf %29, %26 : vector<160x128xf32>
    %31 = arith.select %28, %26, %30 : vector<160x128xi1>, vector<160x128xf32>
    %c0_17 = arith.constant 0 : index
    %c0_18 = arith.constant 0 : index
    %32 = vector.load %arg5[%c0_17, %c0_18] : memref<160x160xbf16, #tpu.memory_space<vmem>>, vector<160x160xbf16>
    %33 = arith.truncf %31 : vector<160x128xf32> to vector<160x128xbf16>
    %cst_19 = arith.constant dense<0.000000e+00> : vector<160x128xf32>
    %34 = tpu.matmul %32, %33, %cst_19 {dimension_numbers = #tpu.dot_dimension_numbers<[1], [0], [0], [1], [0, 0, 1, 1], [], []>} : vector<160x160xbf16>, vector<160x128xbf16>, vector<160x128xf32> -> vector<160x128xf32>
    %c0_20 = arith.constant 0 : index
    %c0_21 = arith.constant 0 : index
    %35 = vector.load %arg6[%c0_20, %c0_21] : memref<160x1xf32, #tpu.memory_space<vmem>>, vector<160x1xf32>
    %36 = vector.broadcast %35 : vector<160x1xf32> to vector<160x128xf32>
    %37 = arith.addf %34, %36 : vector<160x128xf32>
    %cst_22 = arith.constant 0.000000e+00 : f32
    %38 = vector.broadcast %cst_22 : f32 to vector<160x128xf32>
    %39 = arith.cmpf oge, %37, %38 : vector<160x128xf32>
    %cst_23 = arith.constant 0.00999999977 : f32
    %40 = vector.broadcast %cst_23 : f32 to vector<160x128xf32>
    %41 = arith.mulf %40, %37 : vector<160x128xf32>
    %42 = arith.select %39, %37, %41 : vector<160x128xi1>, vector<160x128xf32>
    %c0_24 = arith.constant 0 : index
    %c0_25 = arith.constant 0 : index
    %43 = vector.load %arg7[%c0_24, %c0_25] : memref<160x160xbf16, #tpu.memory_space<vmem>>, vector<160x160xbf16>
    %44 = arith.truncf %42 : vector<160x128xf32> to vector<160x128xbf16>
    %cst_26 = arith.constant dense<0.000000e+00> : vector<160x128xf32>
    %45 = tpu.matmul %43, %44, %cst_26 {dimension_numbers = #tpu.dot_dimension_numbers<[1], [0], [0], [1], [0, 0, 1, 1], [], []>} : vector<160x160xbf16>, vector<160x128xbf16>, vector<160x128xf32> -> vector<160x128xf32>
    %c0_27 = arith.constant 0 : index
    %c0_28 = arith.constant 0 : index
    %46 = vector.load %arg8[%c0_27, %c0_28] : memref<160x1xf32, #tpu.memory_space<vmem>>, vector<160x1xf32>
    %47 = vector.broadcast %46 : vector<160x1xf32> to vector<160x128xf32>
    %48 = arith.addf %45, %47 : vector<160x128xf32>
    %49 = arith.addf %48, %31 : vector<160x128xf32>
    %cst_29 = arith.constant 0.000000e+00 : f32
    %50 = vector.broadcast %cst_29 : f32 to vector<160x128xf32>
    %51 = arith.cmpf oge, %49, %50 : vector<160x128xf32>
    %cst_30 = arith.constant 0.00999999977 : f32
    %52 = vector.broadcast %cst_30 : f32 to vector<160x128xf32>
    %53 = arith.mulf %52, %49 : vector<160x128xf32>
    %54 = arith.select %51, %49, %53 : vector<160x128xi1>, vector<160x128xf32>
    %c0_31 = arith.constant 0 : index
    %c0_32 = arith.constant 0 : index
    %55 = vector.load %arg9[%c0_31, %c0_32] : memref<160x160xbf16, #tpu.memory_space<vmem>>, vector<160x160xbf16>
    %56 = arith.truncf %54 : vector<160x128xf32> to vector<160x128xbf16>
    %cst_33 = arith.constant dense<0.000000e+00> : vector<160x128xf32>
    %57 = tpu.matmul %55, %56, %cst_33 {dimension_numbers = #tpu.dot_dimension_numbers<[1], [0], [0], [1], [0, 0, 1, 1], [], []>} : vector<160x160xbf16>, vector<160x128xbf16>, vector<160x128xf32> -> vector<160x128xf32>
    %c0_34 = arith.constant 0 : index
    %c0_35 = arith.constant 0 : index
    %58 = vector.load %arg10[%c0_34, %c0_35] : memref<160x1xf32, #tpu.memory_space<vmem>>, vector<160x1xf32>
    %59 = vector.broadcast %58 : vector<160x1xf32> to vector<160x128xf32>
    %60 = arith.addf %57, %59 : vector<160x128xf32>
    %cst_36 = arith.constant 0.000000e+00 : f32
    %61 = vector.broadcast %cst_36 : f32 to vector<160x128xf32>
    %62 = arith.cmpf oge, %60, %61 : vector<160x128xf32>
    %cst_37 = arith.constant 0.00999999977 : f32
    %63 = vector.broadcast %cst_37 : f32 to vector<160x128xf32>
    %64 = arith.mulf %63, %60 : vector<160x128xf32>
    %65 = arith.select %62, %60, %64 : vector<160x128xi1>, vector<160x128xf32>
    %c0_38 = arith.constant 0 : index
    %c0_39 = arith.constant 0 : index
    %66 = vector.load %arg11[%c0_38, %c0_39] : memref<8x160xbf16, #tpu.memory_space<vmem>>, vector<8x160xbf16>
    %67 = arith.truncf %65 : vector<160x128xf32> to vector<160x128xbf16>
    %cst_40 = arith.constant dense<0.000000e+00> : vector<8x128xf32>
    %68 = tpu.matmul %66, %67, %cst_40 {dimension_numbers = #tpu.dot_dimension_numbers<[1], [0], [0], [1], [0, 0, 1, 1], [], []>} : vector<8x160xbf16>, vector<160x128xbf16>, vector<8x128xf32> -> vector<8x128xf32>
    %69 = arith.negf %68 : vector<8x128xf32>
    %70 = math.exp %69 : vector<8x128xf32>
    %cst_41 = arith.constant 1.000000e+00 : f32
    %71 = vector.broadcast %cst_41 : f32 to vector<8x128xf32>
    %72 = arith.addf %71, %70 : vector<8x128xf32>
    %73 = arith.divf %71, %72 : vector<8x128xf32>
    %c0_42 = arith.constant 0 : index
    %c0_43 = arith.constant 0 : index
    %74 = vector.load %arg12[%c0_42, %c0_43] : memref<8x128xf32, #tpu.memory_space<vmem>>, vector<8x128xf32>
    tpu.vector_store %arg12[%c0_42, %c0_43], %73 {strides = array<i32>} : memref<8x128xf32, #tpu.memory_space<vmem>>, vector<8x128xf32>,
    return
  }
  func.func @transform_0(%arg0: i32) -> (i32, i32, i32) {
    %c0_i32 = arith.constant 0 : i32
    %c0_i32_0 = arith.constant 0 : i32
    %c0_i32_1 = arith.constant 0 : i32
    return %c0_i32, %c0_i32_0, %arg0 : i32, i32, i32
  }
  func.func @transform_1(%arg0: i32) -> (i32, i32) {
    %c0_i32 = arith.constant 0 : i32
    %c0_i32_0 = arith.constant 0 : i32
    %c0_i32_1 = arith.constant 0 : i32
    return %c0_i32, %c0_i32_0 : i32, i32
  }
  func.func @transform_2(%arg0: i32) -> (i32, i32) {
    %c0_i32 = arith.constant 0 : i32
    %c0_i32_0 = arith.constant 0 : i32
    %c0_i32_1 = arith.constant 0 : i32
    return %c0_i32, %c0_i32_0 : i32, i32
  }
  func.func @transform_3(%arg0: i32) -> (i32, i32) {
    %c0_i32 = arith.constant 0 : i32
    %c0_i32_0 = arith.constant 0 : i32
    %c0_i32_1 = arith.constant 0 : i32
    return %c0_i32, %c0_i32_0 : i32, i32
  }
  func.func @transform_4(%arg0: i32) -> (i32, i32) {
    %c0_i32 = arith.constant 0 : i32
    %c0_i32_0 = arith.constant 0 : i32
    %c0_i32_1 = arith.constant 0 : i32
    return %c0_i32, %c0_i32_0 : i32, i32
  }
  func.func @transform_5(%arg0: i32) -> (i32, i32) {
    %c0_i32 = arith.constant 0 : i32
    %c0_i32_0 = arith.constant 0 : i32
    %c0_i32_1 = arith.constant 0 : i32
    return %c0_i32, %c0_i32_0 : i32, i32
  }
  func.func @transform_6(%arg0: i32) -> (i32, i32) {
    %c0_i32 = arith.constant 0 : i32
    %c0_i32_0 = arith.constant 0 : i32
    %c0_i32_1 = arith.constant 0 : i32
    return %c0_i32, %c0_i32_0 : i32, i32
  }
  func.func @transform_7(%arg0: i32) -> (i32, i32) {
    %c0_i32 = arith.constant 0 : i32
    %c0_i32_0 = arith.constant 0 : i32
    %c0_i32_1 = arith.constant 0 : i32
    return %c0_i32, %c0_i32_0 : i32, i32
  }
  func.func @transform_8(%arg0: i32) -> (i32, i32) {
    %c0_i32 = arith.constant 0 : i32
    %c0_i32_0 = arith.constant 0 : i32
    %c0_i32_1 = arith.constant 0 : i32
    return %c0_i32, %c0_i32_0 : i32, i32
  }
  func.func @transform_9(%arg0: i32) -> (i32, i32) {
    %c0_i32 = arith.constant 0 : i32
    %c0_i32_0 = arith.constant 0 : i32
    %c0_i32_1 = arith.constant 0 : i32
    return %c0_i32, %c0_i32_0 : i32, i32
  }
  func.func @transform_10(%arg0: i32) -> (i32, i32) {
    %c0_i32 = arith.constant 0 : i32
    %c0_i32_0 = arith.constant 0 : i32
    %c0_i32_1 = arith.constant 0 : i32
    return %c0_i32, %c0_i32_0 : i32, i32
  }
  func.func @transform_11(%arg0: i32) -> (i32, i32) {
    %c0_i32 = arith.constant 0 : i32
    %c0_i32_0 = arith.constant 0 : i32
    return %c0_i32, %arg0 : i32, i32
  }
}

</mosaic_0001>

<llo_original>
// kernel: pos3d_discriminator.1
$region0: #{pos3d_discriminator.1}
  #allocation0 [shape = 'u32[]', space=smem, size = 0x4, offset = 0x4, fixed_abs, tag = 'smem constant byte address 0x4 - core index']
  #allocation1 [shape = 'u32[144,128]{1,0:T(1,128)}', space=vmem, size = 0x12000, scoped, tag = 'internal scratch']
  %s0 = inlined_call_operand.vmem [shape: bf16[3,16,128], index: 0, kind: input, shape index: {}]
  %s1 = inlined_call_operand.vmem [shape: bf16[160,16], index: 1, kind: input, shape index: {}]
  %s2 = inlined_call_operand.vmem [shape: bf16[160,80], index: 2, kind: input, shape index: {}]
  %s3 = inlined_call_operand.vmem [shape: f32[160,1], index: 3, kind: input, shape index: {}]
  %s4 = inlined_call_operand.vmem [shape: bf16[160,160], index: 4, kind: input, shape index: {}]
  %s5 = inlined_call_operand.vmem [shape: f32[160,1], index: 5, kind: input, shape index: {}]
  %s6 = inlined_call_operand.vmem [shape: bf16[160,160], index: 6, kind: input, shape index: {}]
  %s7 = inlined_call_operand.vmem [shape: f32[160,1], index: 7, kind: input, shape index: {}]
  %s8 = inlined_call_operand.vmem [shape: bf16[160,160], index: 8, kind: input, shape index: {}]
  %s9 = inlined_call_operand.vmem [shape: f32[160,1], index: 9, kind: input, shape index: {}]
  %s10 = inlined_call_operand.vmem [shape: bf16[8,160], index: 10, kind: input, shape index: {}]
  %s11 = inlined_call_operand.vmem [shape: f32[8,128], index: 11, kind: output, shape index: {}]
  %s12 = sld [smem:[#allocation0]]
  $region54: #{pos3d_discriminator.1} parent=0
    _
  %s14 = ssub.s32 1, %s12
  %s15 = scalar_select 0, %s14, %s12
  // Predicated region
  $region2: #{pos3d_discriminator.1} parent=0 // pred_check
    _
  $region3: #{pos3d_discriminator.1} parent=0 // pred_check_branch
    %17 = sbr.rel (0) target = $region5
  $region4: #{pos3d_discriminator.1} parent=0 // pred_region
    _
  $region5: #{pos3d_discriminator.1} parent=0 // pred_fallthru
    _
  // Predicated region
  $region6: #{pos3d_discriminator.1} parent=0 // pred_check
    _
  $region7: #{pos3d_discriminator.1} parent=0 // pred_check_branch
    %19 = sbr.rel (0) target = $region9
  $region8: #{pos3d_discriminator.1} parent=0 // pred_region
    _
  $region9: #{pos3d_discriminator.1} parent=0 // pred_fallthru
    _
  // Predicated region
  $region10: #{pos3d_discriminator.1} parent=0 // pred_check
    _
  $region11: #{pos3d_discriminator.1} parent=0 // pred_check_branch
    %21 = sbr.rel (0) target = $region13
  $region12: #{pos3d_discriminator.1} parent=0 // pred_region
    _
  $region13: #{pos3d_discriminator.1} parent=0 // pred_fallthru
    _
  // Predicated region
  $region14: #{pos3d_discriminator.1} parent=0 // pred_check
    _
  $region15: #{pos3d_discriminator.1} parent=0 // pred_check_branch
    %23 = sbr.rel (0) target = $region17
  $region16: #{pos3d_discriminator.1} parent=0 // pred_region
    _
  $region17: #{pos3d_discriminator.1} parent=0 // pred_fallthru
    _
  // Predicated region
  $region18: #{pos3d_discriminator.1} parent=0 // pred_check
    _
  $region19: #{pos3d_discriminator.1} parent=0 // pred_check_branch
    %25 = sbr.rel (0) target = $region21
  $region20: #{pos3d_discriminator.1} parent=0 // pred_region
    _
  $region21: #{pos3d_discriminator.1} parent=0 // pred_fallthru
    _
  // Predicated region
  $region22: #{pos3d_discriminator.1} parent=0 // pred_check
    _
  $region23: #{pos3d_discriminator.1} parent=0 // pred_check_branch
    %27 = sbr.rel (0) target = $region25
  $region24: #{pos3d_discriminator.1} parent=0 // pred_region
    _
  $region25: #{pos3d_discriminator.1} parent=0 // pred_fallthru
    _
  // Predicated region
  $region26: #{pos3d_discriminator.1} parent=0 // pred_check
    _
  $region27: #{pos3d_discriminator.1} parent=0 // pred_check_branch
    %29 = sbr.rel (0) target = $region29
  $region28: #{pos3d_discriminator.1} parent=0 // pred_region
    _
  $region29: #{pos3d_discriminator.1} parent=0 // pred_fallthru
    _
  // Predicated region
  $region30: #{pos3d_discriminator.1} parent=0 // pred_check
    _
  $region31: #{pos3d_discriminator.1} parent=0 // pred_check_branch
    %31 = sbr.rel (0) target = $region33
  $region32: #{pos3d_discriminator.1} parent=0 // pred_region
    _
  $region33: #{pos3d_discriminator.1} parent=0 // pred_fallthru
    _
  // Predicated region
  $region34: #{pos3d_discriminator.1} parent=0 // pred_check
    _
  $region35: #{pos3d_discriminator.1} parent=0 // pred_check_branch
    %33 = sbr.rel (0) target = $region37
  $region36: #{pos3d_discriminator.1} parent=0 // pred_region
    _
  $region37: #{pos3d_discriminator.1} parent=0 // pred_fallthru
    _
  // Predicated region
  $region38: #{pos3d_discriminator.1} parent=0 // pred_check
    _
  $region39: #{pos3d_discriminator.1} parent=0 // pred_check_branch
    %35 = sbr.rel (0) target = $region41
  $region40: #{pos3d_discriminator.1} parent=0 // pred_region
    _
  $region41: #{pos3d_discriminator.1} parent=0 // pred_fallthru
    _
  // Predicated region
  $region42: #{pos3d_discriminator.1} parent=0 // pred_check
    _
  $region43: #{pos3d_discriminator.1} parent=0 // pred_check_branch
    %37 = sbr.rel (0) target = $region45
  $region44: #{pos3d_discriminator.1} parent=0 // pred_region
    _
  $region45: #{pos3d_discriminator.1} parent=0 // pred_fallthru
    _
  %v39 = vld [vmem:[%s1] sm:$0xf]
  %v40 = vld [vmem:[%s1 + $0x4] sm:$0xf]
  %v41 = vld [vmem:[%s1 + $0x8] sm:$0xf]
  %v42 = vld [vmem:[%s1 + $0xc] sm:$0xf]
  %v43 = vld [vmem:[%s1 + $0x10] sm:$0xf]
  %v44 = vld [vmem:[%s1 + $0x14] sm:$0xf]
  %v45 = vld [vmem:[%s1 + $0x18] sm:$0xf]
  %v46 = vld [vmem:[%s1 + $0x1c] sm:$0xf]
  %v47 = vld [vmem:[%s1 + $0x20] sm:$0xf]
  %v48 = vld [vmem:[%s1 + $0x24] sm:$0xf]
  %v49 = vld [vmem:[%s1 + $0x28] sm:$0xf]
  %v50 = vld [vmem:[%s1 + $0x2c] sm:$0xf]
  %v51 = vld [vmem:[%s1 + $0x30] sm:$0xf]
  %v52 = vld [vmem:[%s1 + $0x34] sm:$0xf]
  %v53 = vld [vmem:[%s1 + $0x38] sm:$0xf]
  %v54 = vld [vmem:[%s1 + $0x3c] sm:$0xf]
  %v55 = vld [vmem:[%s1 + $0x40] sm:$0xf]
  %v56 = vld [vmem:[%s1 + $0x44] sm:$0xf]
  %v57 = vld [vmem:[%s1 + $0x48] sm:$0xf]
  %v58 = vld [vmem:[%s1 + $0x4c] sm:$0xf]
  %v59 = vld [vmem:[%s0] sm:$0xf]
  %v60 = vld [vmem:[%s0 + $0x4] sm:$0xf]
  %v81 = vunpack.c.l.b16 %v39
  %v82 = vunpack.c.l.b16 %v40
  %v83 = vunpack.c.l.b16 %v41
  %v84 = vunpack.c.l.b16 %v42
  %v85 = vunpack.c.l.b16 %v43
  %v86 = vunpack.c.l.b16 %v44
  %v87 = vunpack.c.l.b16 %v45
  %v88 = vunpack.c.l.b16 %v46
  %v89 = vunpack.c.l.b16 %v47
  %v90 = vunpack.c.l.b16 %v48
  %v91 = vunpack.c.l.b16 %v49
  %v92 = vunpack.c.l.b16 %v50
  %v93 = vunpack.c.l.b16 %v51
  %v94 = vunpack.c.l.b16 %v52
  %v95 = vunpack.c.l.b16 %v53
  %v96 = vunpack.c.l.b16 %v54
  %v97 = vunpack.c.l.b16 %v55
  %v98 = vunpack.c.l.b16 %v56
  %v99 = vunpack.c.l.b16 %v57
  %v100 = vunpack.c.l.b16 %v58
  %v101 = vpack.c.b16 %v82, %v81
  %v102 = vpack.c.b16 %v84, %v83
  %v103 = vpack.c.b16 %v86, %v85
  %v104 = vpack.c.b16 %v88, %v87
  %v105 = vpack.c.b16 %v90, %v89
  %v106 = vpack.c.b16 %v92, %v91
  %v107 = vpack.c.b16 %v94, %v93
  %v108 = vpack.c.b16 %v96, %v95
  %v109 = vpack.c.b16 %v98, %v97
  %v110 = vpack.c.b16 %v100, %v99
  %v113 = vunpack.c.l.b16 %v59
  %v114 = vunpack.c.l.b16 %v60
  %v115 = vpack.c.b16 %v114, %v113
  %vm117 = vcmask 130048
  %v119 = vsel %vm117, %v101, 0
  %v122 = vsel %vm117, %v102, 0
  %v125 = vsel %vm117, %v103, 0
  %v128 = vsel %vm117, %v104, 0
  %v131 = vsel %vm117, %v105, 0
  %v134 = vsel %vm117, %v106, 0
  %v137 = vsel %vm117, %v107, 0
  %v140 = vsel %vm117, %v108, 0
  %v143 = vsel %vm117, %v109, 0
  %v146 = vsel %vm117, %v110, 0
  %148 = vmatprep.subr.bf16.mxu0 0
  %149 = vmatpush1.bf16.msra.mxu0 %v115
  %150 = vmatprep.subr.bf16.mxu0 0
  %151 = vmatpush1.bf16.msra.mxu0 0
  %152 = vmatprep.subr.bf16.mxu0 0
  %153 = vmatpush1.bf16.msra.mxu0 0
  %154 = vmatprep.subr.bf16.mxu0 0
  %155 = vmatpush1.bf16.msra.mxu0 0
  %156 = vmatprep.subr.bf16.mxu0 0
  %157 = vmatpush1.bf16.msra.mxu0 0
  %158 = vmatprep.subr.bf16.mxu0 0
  %159 = vmatpush1.bf16.msra.mxu0 0
  %160 = vmatprep.subr.bf16.mxu0 0
  %161 = vmatpush1.bf16.msra.mxu0 0
  %162 = vmatprep.subr.bf16.mxu0 0
  %163 = vmatpush1.bf16.msra.mxu0 0
  %164 = vmatprep.subr.bf16.mxu0 0
  %165 = vmatpush1.bf16.msra.mxu0 0
  %166 = vmatprep.subr.bf16.mxu0 0
  %167 = vmatpush1.bf16.msra.mxu0 0
  %168 = vmatprep.subr.bf16.mxu0 0
  %169 = vmatpush1.bf16.msra.mxu0 0
  %170 = vmatprep.subr.bf16.mxu0 0
  %171 = vmatpush1.bf16.msra.mxu0 0
  %172 = vmatprep.subr.bf16.mxu0 0
  %173 = vmatpush1.bf16.msra.mxu0 0
  %174 = vmatprep.subr.bf16.mxu0 0
  %175 = vmatpush1.bf16.msra.mxu0 0
  %176 = vmatprep.subr.bf16.mxu0 0
  %177 = vmatpush1.bf16.msra.mxu0 0
  %178 = vmatprep.subr.bf16.mxu0 0
  %179 = vmatpush1.bf16.msra.mxu0 0
  %180 = vmatprep.mubr.bf16.mxu0 0
  %181 = vmatmul.mubr.bf16.gmra.mrb[0].mxu0 %v119
  %v182 = vpop.f32.mrb[0].mxu0
  %v183 = vadd.f32 0.0, %v182
  %v184 = vpop.f32.mrb[0].mxu0
  %v185 = vpop.f32.mrb[0].mxu0
  %v186 = vadd.f32 0.0, %v185
  %v187 = vpop.f32.mrb[0].mxu0
  %188 = vmatprep.mubr.bf16.mxu0 0
  %189 = vmatmul.mubr.bf16.gmra.mrb[0].mxu0 %v122
  %v190 = vpop.f32.mrb[0].mxu0
  %v191 = vadd.f32 0.0, %v190
  %v192 = vpop.f32.mrb[0].mxu0
  %v193 = vpop.f32.mrb[0].mxu0
  %v194 = vadd.f32 0.0, %v193
  %v195 = vpop.f32.mrb[0].mxu0
  %196 = vmatprep.mubr.bf16.mxu0 0
  %197 = vmatmul.mubr.bf16.gmra.mrb[0].mxu0 %v125
  %v198 = vpop.f32.mrb[0].mxu0
  %v199 = vadd.f32 0.0, %v198
  %v200 = vpop.f32.mrb[0].mxu0
  %v201 = vpop.f32.mrb[0].mxu0
  %v202 = vadd.f32 0.0, %v201
  %v203 = vpop.f32.mrb[0].mxu0
  %204 = vmatprep.mubr.bf16.mxu0 0
  %205 = vmatmul.mubr.bf16.gmra.mrb[0].mxu0 %v128
  %v206 = vpop.f32.mrb[0].mxu0
  %v207 = vadd.f32 0.0, %v206
  %v208 = vpop.f32.mrb[0].mxu0
  %v209 = vpop.f32.mrb[0].mxu0
  %v210 = vadd.f32 0.0, %v209
  %v211 = vpop.f32.mrb[0].mxu0
  %212 = vmatprep.mubr.bf16.mxu0 0
  %213 = vmatmul.mubr.bf16.gmra.mrb[0].mxu0 %v131
  %v214 = vpop.f32.mrb[0].mxu0
  %v215 = vadd.f32 0.0, %v214
  %v216 = vpop.f32.mrb[0].mxu0
  %v217 = vpop.f32.mrb[0].mxu0
  %v218 = vadd.f32 0.0, %v217
  %v219 = vpop.f32.mrb[0].mxu0
  %220 = vmatprep.mubr.bf16.mxu0 0
  %221 = vmatmul.mubr.bf16.gmra.mrb[0].mxu0 %v134
  %v222 = vpop.f32.mrb[0].mxu0
  %v223 = vadd.f32 0.0, %v222
  %v224 = vpop.f32.mrb[0].mxu0
  %v225 = vpop.f32.mrb[0].mxu0
  %v226 = vadd.f32 0.0, %v225
  %v227 = vpop.f32.mrb[0].mxu0
  %228 = vmatprep.mubr.bf16.mxu0 0
  %229 = vmatmul.mubr.bf16.gmra.mrb[0].mxu0 %v137
  %v230 = vpop.f32.mrb[0].mxu0
  %v231 = vadd.f32 0.0, %v230
  %v232 = vpop.f32.mrb[0].mxu0
  %v233 = vpop.f32.mrb[0].mxu0
  %v234 = vadd.f32 0.0, %v233
  %v235 = vpop.f32.mrb[0].mxu0
  %236 = vmatprep.mubr.bf16.mxu0 0
  %237 = vmatmul.mubr.bf16.gmra.mrb[0].mxu0 %v140
  %v238 = vpop.f32.mrb[0].mxu0
  %v239 = vadd.f32 0.0, %v238
  %v240 = vpop.f32.mrb[0].mxu0
  %v241 = vpop.f32.mrb[0].mxu0
  %v242 = vadd.f32 0.0, %v241
  %v243 = vpop.f32.mrb[0].mxu0
  %244 = vmatprep.mubr.bf16.mxu0 0
  %245 = vmatmul.mubr.bf16.gmra.mrb[0].mxu0 %v143
  %v246 = vpop.f32.mrb[0].mxu0
  %v247 = vadd.f32 0.0, %v246
  %v248 = vpop.f32.mrb[0].mxu0
  %v249 = vpop.f32.mrb[0].mxu0
  %v250 = vadd.f32 0.0, %v249
  %v251 = vpop.f32.mrb[0].mxu0
  %252 = vmatprep.mubr.bf16.mxu0 0
  %253 = vmatmul.mubr.bf16.gmra.mrb[0].mxu0 %v146
  %v254 = vpop.f32.mrb[0].mxu0
  %v255 = vadd.f32 0.0, %v254
  %v256 = vpop.f32.mrb[0].mxu0
  %v257 = vpop.f32.mrb[0].mxu0
  %v258 = vadd.f32 0.0, %v257
  %v259 = vpop.f32.mrb[0].mxu0
  %260 = vdwg.mxu0
  %v261 = vmul.f32 %v183, %v223
  %v262 = vmul.f32 %v186, %v226
  %v263 = vmul.f32 %v191, %v231
  %v264 = vmul.f32 %v194, %v234
  %v265 = vmul.f32 %v199, %v239
  %v266 = vmul.f32 %v202, %v242
  %v267 = vmul.f32 %v207, %v247
  %v268 = vmul.f32 %v210, %v250
  %v269 = vmul.f32 %v215, %v255
  %v270 = vmul.f32 %v218, %v258
  %s271 = scalar_lea.vmem %s0, 8
  %v272 = vld [vmem:[%s271] sm:$0xf]
  %v273 = vld [vmem:[%s271 + $0x4] sm:$0xf]
  %v276 = vunpack.c.l.b16 %v272
  %v277 = vunpack.c.l.b16 %v273
  %v278 = vpack.c.b16 %v277, %v276
  %280 = vmatprep.subr.bf16.mxu0 0
  %281 = vmatpush1.bf16.msra.mxu0 %v278
  %282 = vmatprep.subr.bf16.mxu0 0
  %283 = vmatpush1.bf16.msra.mxu0 0
  %284 = vmatprep.subr.bf16.mxu0 0
  %285 = vmatpush1.bf16.msra.mxu0 0
  %286 = vmatprep.subr.bf16.mxu0 0
  %287 = vmatpush1.bf16.msra.mxu0 0
  %288 = vmatprep.subr.bf16.mxu0 0
  %289 = vmatpush1.bf16.msra.mxu0 0
  %290 = vmatprep.subr.bf16.mxu0 0
  %291 = vmatpush1.bf16.msra.mxu0 0
  %292 = vmatprep.subr.bf16.mxu0 0
  %293 = vmatpush1.bf16.msra.mxu0 0
  %294 = vmatprep.subr.bf16.mxu0 0
  %295 = vmatpush1.bf16.msra.mxu0 0
  %296 = vmatprep.subr.bf16.mxu0 0
  %297 = vmatpush1.bf16.msra.mxu0 0
  %298 = vmatprep.subr.bf16.mxu0 0
  %299 = vmatpush1.bf16.msra.mxu0 0
  %300 = vmatprep.subr.bf16.mxu0 0
  %301 = vmatpush1.bf16.msra.mxu0 0
  %302 = vmatprep.subr.bf16.mxu0 0
  %303 = vmatpush1.bf16.msra.mxu0 0
  %304 = vmatprep.subr.bf16.mxu0 0
  %305 = vmatpush1.bf16.msra.mxu0 0
  %306 = vmatprep.subr.bf16.mxu0 0
  %307 = vmatpush1.bf16.msra.mxu0 0
  %308 = vmatprep.subr.bf16.mxu0 0
  %309 = vmatpush1.bf16.msra.mxu0 0
  %310 = vmatprep.subr.bf16.mxu0 0
  %311 = vmatpush1.bf16.msra.mxu0 0
  %312 = vmatprep.mubr.bf16.mxu0 0
  %313 = vmatmul.mubr.bf16.gmra.mrb[0].mxu0 %v119
  %v314 = vpop.f32.mrb[0].mxu0
  %v315 = vadd.f32 0.0, %v314
  %v316 = vpop.f32.mrb[0].mxu0
  %v317 = vpop.f32.mrb[0].mxu0
  %v318 = vadd.f32 0.0, %v317
  %v319 = vpop.f32.mrb[0].mxu0
  %320 = vmatprep.mubr.bf16.mxu0 0
  %321 = vmatmul.mubr.bf16.gmra.mrb[0].mxu0 %v122
  %v322 = vpop.f32.mrb[0].mxu0
  %v323 = vadd.f32 0.0, %v322
  %v324 = vpop.f32.mrb[0].mxu0
  %v325 = vpop.f32.mrb[0].mxu0
  %v326 = vadd.f32 0.0, %v325
  %v327 = vpop.f32.mrb[0].mxu0
  %328 = vmatprep.mubr.bf16.mxu0 0
  %329 = vmatmul.mubr.bf16.gmra.mrb[0].mxu0 %v125
  %v330 = vpop.f32.mrb[0].mxu0
  %v331 = vadd.f32 0.0, %v330
  %v332 = vpop.f32.mrb[0].mxu0
  %v333 = vpop.f32.mrb[0].mxu0
  %v334 = vadd.f32 0.0, %v333
  %v335 = vpop.f32.mrb[0].mxu0
  %336 = vmatprep.mubr.bf16.mxu0 0
  %337 = vmatmul.mubr.bf16.gmra.mrb[0].mxu0 %v128
  %v338 = vpop.f32.mrb[0].mxu0
  %v339 = vadd.f32 0.0, %v338
  %v340 = vpop.f32.mrb[0].mxu0
  %v341 = vpop.f32.mrb[0].mxu0
  %v342 = vadd.f32 0.0, %v341
  %v343 = vpop.f32.mrb[0].mxu0
  %344 = vmatprep.mubr.bf16.mxu0 0
  %345 = vmatmul.mubr.bf16.gmra.mrb[0].mxu0 %v131
  %v346 = vpop.f32.mrb[0].mxu0
  %v347 = vadd.f32 0.0, %v346
  %v348 = vpop.f32.mrb[0].mxu0
  %v349 = vpop.f32.mrb[0].mxu0
  %v350 = vadd.f32 0.0, %v349
  %v351 = vpop.f32.mrb[0].mxu0
  %352 = vmatprep.mubr.bf16.mxu0 0
  %353 = vmatmul.mubr.bf16.gmra.mrb[0].mxu0 %v134
  %v354 = vpop.f32.mrb[0].mxu0
  %v355 = vadd.f32 0.0, %v354
  %v356 = vpop.f32.mrb[0].mxu0
  %v357 = vpop.f32.mrb[0].mxu0
  %v358 = vadd.f32 0.0, %v357
  %v359 = vpop.f32.mrb[0].mxu0
  %360 = vmatprep.mubr.bf16.mxu0 0
  %361 = vmatmul.mubr.bf16.gmra.mrb[0].mxu0 %v137
  %v362 = vpop.f32.mrb[0].mxu0
  %v363 = vadd.f32 0.0, %v362
  %v364 = vpop.f32.mrb[0].mxu0
  %v365 = vpop.f32.mrb[0].mxu0
  %v366 = vadd.f32 0.0, %v365
  %v367 = vpop.f32.mrb[0].mxu0
  %368 = vmatprep.mubr.bf16.mxu0 0
  %369 = vmatmul.mubr.bf16.gmra.mrb[0].mxu0 %v140
  %v370 = vpop.f32.mrb[0].mxu0
  %v371 = vadd.f32 0.0, %v370
  %v372 = vpop.f32.mrb[0].mxu0
  %v373 = vpop.f32.mrb[0].mxu0
  %v374 = vadd.f32 0.0, %v373
  %v375 = vpop.f32.mrb[0].mxu0
  %376 = vmatprep.mubr.bf16.mxu0 0
  %377 = vmatmul.mubr.bf16.gmra.mrb[0].mxu0 %v143
  %v378 = vpop.f32.mrb[0].mxu0
  %v379 = vadd.f32 0.0, %v378
  %v380 = vpop.f32.mrb[0].mxu0
  %v381 = vpop.f32.mrb[0].mxu0
  %v382 = vadd.f32 0.0, %v381
  %v383 = vpop.f32.mrb[0].mxu0
  %384 = vmatprep.mubr.bf16.mxu0 0
  %385 = vmatmul.mubr.bf16.gmra.mrb[0].mxu0 %v146
  %v386 = vpop.f32.mrb[0].mxu0
  %v387 = vadd.f32 0.0, %v386
  %v388 = vpop.f32.mrb[0].mxu0
  %v389 = vpop.f32.mrb[0].mxu0
  %v390 = vadd.f32 0.0, %v389
  %v391 = vpop.f32.mrb[0].mxu0
  %392 = vdwg.mxu0
  %v393 = vmul.f32 %v315, %v355
  %v394 = vmul.f32 %v318, %v358
  %v395 = vmul.f32 %v323, %v363
  %v396 = vmul.f32 %v326, %v366
  %v397 = vmul.f32 %v331, %v371
  %v398 = vmul.f32 %v334, %v374
  %v399 = vmul.f32 %v339, %v379
  %v400 = vmul.f32 %v342, %v382
  %v401 = vmul.f32 %v347, %v387
  %v402 = vmul.f32 %v350, %v390
  %v403 = vadd.f32 %v261, %v393
  %v404 = vadd.f32 %v262, %v394
  %v405 = vadd.f32 %v263, %v395
  %v406 = vadd.f32 %v264, %v396
  %v407 = vadd.f32 %v265, %v397
  %v408 = vadd.f32 %v266, %v398
  %v409 = vadd.f32 %v267, %v399
  %v410 = vadd.f32 %v268, %v400
  %v411 = vadd.f32 %v269, %v401
  %v412 = vadd.f32 %v270, %v402
  %s413 = scalar_lea.vmem %s0, 16
  %v414 = vld [vmem:[%s413] sm:$0xf]
  %v415 = vld [vmem:[%s413 + $0x4] sm:$0xf]
  %v418 = vunpack.c.l.b16 %v414
  %v419 = vunpack.c.l.b16 %v415
  %v420 = vpack.c.b16 %v419, %v418
  %422 = vmatprep.subr.bf16.mxu0 0
  %423 = vmatpush1.bf16.msra.mxu0 %v420
  %424 = vmatprep.subr.bf16.mxu0 0
  %425 = vmatpush1.bf16.msra.mxu0 0
  %426 = vmatprep.subr.bf16.mxu0 0
  %427 = vmatpush1.bf16.msra.mxu0 0
  %428 = vmatprep.subr.bf16.mxu0 0
  %429 = vmatpush1.bf16.msra.mxu0 0
  %430 = vmatprep.subr.bf16.mxu0 0
  %431 = vmatpush1.bf16.msra.mxu0 0
  %432 = vmatprep.subr.bf16.mxu0 0
  %433 = vmatpush1.bf16.msra.mxu0 0
  %434 = vmatprep.subr.bf16.mxu0 0
  %435 = vmatpush1.bf16.msra.mxu0 0
  %436 = vmatprep.subr.bf16.mxu0 0
  %437 = vmatpush1.bf16.msra.mxu0 0
  %438 = vmatprep.subr.bf16.mxu0 0
  %439 = vmatpush1.bf16.msra.mxu0 0
  %440 = vmatprep.subr.bf16.mxu0 0
  %441 = vmatpush1.bf16.msra.mxu0 0
  %442 = vmatprep.subr.bf16.mxu0 0
  %443 = vmatpush1.bf16.msra.mxu0 0
  %444 = vmatprep.subr.bf16.mxu0 0
  %445 = vmatpush1.bf16.msra.mxu0 0
  %446 = vmatprep.subr.bf16.mxu0 0
  %447 = vmatpush1.bf16.msra.mxu0 0
  %448 = vmatprep.subr.bf16.mxu0 0
  %449 = vmatpush1.bf16.msra.mxu0 0
  %450 = vmatprep.subr.bf16.mxu0 0
  %451 = vmatpush1.bf16.msra.mxu0 0
  %452 = vmatprep.subr.bf16.mxu0 0
  %453 = vmatpush1.bf16.msra.mxu0 0
  %454 = vmatprep.mubr.bf16.mxu0 0
  %455 = vmatmul.mubr.bf16.gmra.mrb[0].mxu0 %v119
  %v456 = vpop.f32.mrb[0].mxu0
  %v457 = vadd.f32 0.0, %v456
  %v458 = vpop.f32.mrb[0].mxu0
  %v459 = vpop.f32.mrb[0].mxu0
  %v460 = vadd.f32 0.0, %v459
  %v461 = vpop.f32.mrb[0].mxu0
  %462 = vmatprep.mubr.bf16.mxu0 0
  %463 = vmatmul.mubr.bf16.gmra.mrb[0].mxu0 %v122
  %v464 = vpop.f32.mrb[0].mxu0
  %v465 = vadd.f32 0.0, %v464
  %v466 = vpop.f32.mrb[0].mxu0
  %v467 = vpop.f32.mrb[0].mxu0
  %v468 = vadd.f32 0.0, %v467
  %v469 = vpop.f32.mrb[0].mxu0
  %470 = vmatprep.mubr.bf16.mxu0 0
  %471 = vmatmul.mubr.bf16.gmra.mrb[0].mxu0 %v125
  %v472 = vpop.f32.mrb[0].mxu0
  %v473 = vadd.f32 0.0, %v472
  %v474 = vpop.f32.mrb[0].mxu0
  %v475 = vpop.f32.mrb[0].mxu0
  %v476 = vadd.f32 0.0, %v475
  %v477 = vpop.f32.mrb[0].mxu0
  %478 = vmatprep.mubr.bf16.mxu0 0
  %479 = vmatmul.mubr.bf16.gmra.mrb[0].mxu0 %v128
  %v480 = vpop.f32.mrb[0].mxu0
  %v481 = vadd.f32 0.0, %v480
  %v482 = vpop.f32.mrb[0].mxu0
  %v483 = vpop.f32.mrb[0].mxu0
  %v484 = vadd.f32 0.0, %v483
  %v485 = vpop.f32.mrb[0].mxu0
  %486 = vmatprep.mubr.bf16.mxu0 0
  %487 = vmatmul.mubr.bf16.gmra.mrb[0].mxu0 %v131
  %v488 = vpop.f32.mrb[0].mxu0
  %v489 = vadd.f32 0.0, %v488
  %v490 = vpop.f32.mrb[0].mxu0
  %v491 = vpop.f32.mrb[0].mxu0
  %v492 = vadd.f32 0.0, %v491
  %v493 = vpop.f32.mrb[0].mxu0
  %494 = vmatprep.mubr.bf16.mxu0 0
  %495 = vmatmul.mubr.bf16.gmra.mrb[0].mxu0 %v134
  %v496 = vpop.f32.mrb[0].mxu0
  %v497 = vadd.f32 0.0, %v496
  %v498 = vpop.f32.mrb[0].mxu0
  %v499 = vpop.f32.mrb[0].mxu0
  %v500 = vadd.f32 0.0, %v499
  %v501 = vpop.f32.mrb[0].mxu0
  %502 = vmatprep.mubr.bf16.mxu0 0
  %503 = vmatmul.mubr.bf16.gmra.mrb[0].mxu0 %v137
  %v504 = vpop.f32.mrb[0].mxu0
  %v505 = vadd.f32 0.0, %v504
  %v506 = vpop.f32.mrb[0].mxu0
  %v507 = vpop.f32.mrb[0].mxu0
  %v508 = vadd.f32 0.0, %v507
  %v509 = vpop.f32.mrb[0].mxu0
  %510 = vmatprep.mubr.bf16.mxu0 0
  %511 = vmatmul.mubr.bf16.gmra.mrb[0].mxu0 %v140
  %v512 = vpop.f32.mrb[0].mxu0
  %v513 = vadd.f32 0.0, %v512
  %v514 = vpop.f32.mrb[0].mxu0
  %v515 = vpop.f32.mrb[0].mxu0
  %v516 = vadd.f32 0.0, %v515
  %v517 = vpop.f32.mrb[0].mxu0
  %518 = vmatprep.mubr.bf16.mxu0 0
  %519 = vmatmul.mubr.bf16.gmra.mrb[0].mxu0 %v143
  %v520 = vpop.f32.mrb[0].mxu0
  %v521 = vadd.f32 0.0, %v520
  %v522 = vpop.f32.mrb[0].mxu0
  %v523 = vpop.f32.mrb[0].mxu0
  %v524 = vadd.f32 0.0, %v523
  %v525 = vpop.f32.mrb[0].mxu0
  %526 = vmatprep.mubr.bf16.mxu0 0
  %527 = vmatmul.mubr.bf16.gmra.mrb[0].mxu0 %v146
  %v528 = vpop.f32.mrb[0].mxu0
  %v529 = vadd.f32 0.0, %v528
  %v530 = vpop.f32.mrb[0].mxu0
  %v531 = vpop.f32.mrb[0].mxu0
  %v532 = vadd.f32 0.0, %v531
  %v533 = vpop.f32.mrb[0].mxu0
  %534 = vdwg.mxu0
  %v535 = vmul.f32 %v457, %v497
  %v536 = vmul.f32 %v460, %v500
  %v537 = vmul.f32 %v465, %v505
  %v538 = vmul.f32 %v468, %v508
  %v539 = vmul.f32 %v473, %v513
  %v540 = vmul.f32 %v476, %v516
  %v541 = vmul.f32 %v481, %v521
  %v542 = vmul.f32 %v484, %v524
  %v543 = vmul.f32 %v489, %v529
  %v544 = vmul.f32 %v492, %v532
  %v545 = vadd.f32 %v403, %v535
  %v546 = vadd.f32 %v404, %v536
  %v547 = vadd.f32 %v405, %v537
  %v548 = vadd.f32 %v406, %v538
  %v549 = vadd.f32 %v407, %v539
  %v550 = vadd.f32 %v408, %v540
  %v551 = vadd.f32 %v409, %v541
  %v552 = vadd.f32 %v410, %v542
  %v553 = vadd.f32 %v411, %v543
  %v554 = vadd.f32 %v412, %v544
  %v555 = vld [vmem:[%s2] sm:$0xf]
  %v556 = vld [vmem:[%s2 + $0x4] sm:$0xf]
  %v557 = vld [vmem:[%s2 + $0x8] sm:$0xf]
  %v558 = vld [vmem:[%s2 + $0xc] sm:$0xf]
  %v559 = vld [vmem:[%s2 + $0x10] sm:$0xf]
  %v560 = vld [vmem:[%s2 + $0x14] sm:$0xf]
  %v561 = vld [vmem:[%s2 + $0x18] sm:$0xf]
  %v562 = vld [vmem:[%s2 + $0x1c] sm:$0xf]
  %v563 = vld [vmem:[%s2 + $0x20] sm:$0xf]
  %v564 = vld [vmem:[%s2 + $0x24] sm:$0xf]
  %v565 = vld [vmem:[%s2 + $0x28] sm:$0xf]
  %v566 = vld [vmem:[%s2 + $0x2c] sm:$0xf]
  %v567 = vld [vmem:[%s2 + $0x30] sm:$0xf]
  %v568 = vld [vmem:[%s2 + $0x34] sm:$0xf]
  %v569 = vld [vmem:[%s2 + $0x38] sm:$0xf]
  %v570 = vld [vmem:[%s2 + $0x3c] sm:$0xf]
  %v571 = vld [vmem:[%s2 + $0x40] sm:$0xf]
  %v572 = vld [vmem:[%s2 + $0x44] sm:$0xf]
  %v573 = vld [vmem:[%s2 + $0x48] sm:$0xf]
  %v574 = vld [vmem:[%s2 + $0x4c] sm:$0xf]
  %v575 = vpack.c.bf16 %v546, %v545
  %v576 = vpack.c.bf16 %v548, %v547
  %v577 = vpack.c.bf16 %v550, %v549
  %v578 = vpack.c.bf16 %v552, %v551
  %v579 = vpack.c.bf16 %v554, %v553
  %v580 = vld [vmem:[%s3] sm:$0xff]
  %v581 = vld [vmem:[%s3 + $0x8] sm:$0xff]
  %v582 = vld [vmem:[%s3 + $0x10] sm:$0xff]
  %v583 = vld [vmem:[%s3 + $0x18] sm:$0xff]
  %v584 = vld [vmem:[%s3 + $0x20] sm:$0xff]
  %v585 = vld [vmem:[%s3 + $0x28] sm:$0xff]
  %v586 = vld [vmem:[%s3 + $0x30] sm:$0xff]
  %v587 = vld [vmem:[%s3 + $0x38] sm:$0xff]
  %v588 = vld [vmem:[%s3 + $0x40] sm:$0xff]
  %v589 = vld [vmem:[%s3 + $0x48] sm:$0xff]
  %v590 = vld [vmem:[%s3 + $0x50] sm:$0xff]
  %v591 = vld [vmem:[%s3 + $0x58] sm:$0xff]
  %v592 = vld [vmem:[%s3 + $0x60] sm:$0xff]
  %v593 = vld [vmem:[%s3 + $0x68] sm:$0xff]
  %v594 = vld [vmem:[%s3 + $0x70] sm:$0xff]
  %v595 = vld [vmem:[%s3 + $0x78] sm:$0xff]
  %v596 = vld [vmem:[%s3 + $0x80] sm:$0xff]
  %v597 = vld [vmem:[%s3 + $0x88] sm:$0xff]
  %v598 = vld [vmem:[%s3 + $0x90] sm:$0xff]
  %v599 = vld [vmem:[%s3 + $0x98] sm:$0xff]
  %601 = vset.pattern.permute.xlu0 0
  %602 = vperm.xlu0 %601, %v580
  %v603 = vpop.permute.xlu0 %602
  %606 = vset.pattern.permute.xlu0 0
  %607 = vperm.xlu0 %606, %v581
  %v608 = vpop.permute.xlu0 %607
  %611 = vset.pattern.permute.xlu0 0
  %612 = vperm.xlu0 %611, %v582
  %v613 = vpop.permute.xlu0 %612
  %616 = vset.pattern.permute.xlu0 0
  %617 = vperm.xlu0 %616, %v583
  %v618 = vpop.permute.xlu0 %617
  %621 = vset.pattern.permute.xlu0 0
  %622 = vperm.xlu0 %621, %v584
  %v623 = vpop.permute.xlu0 %622
  %626 = vset.pattern.permute.xlu0 0
  %627 = vperm.xlu0 %626, %v585
  %v628 = vpop.permute.xlu0 %627
  %631 = vset.pattern.permute.xlu0 0
  %632 = vperm.xlu0 %631, %v586
  %v633 = vpop.permute.xlu0 %632
  %636 = vset.pattern.permute.xlu0 0
  %637 = vperm.xlu0 %636, %v587
  %v638 = vpop.permute.xlu0 %637
  %641 = vset.pattern.permute.xlu0 0
  %642 = vperm.xlu0 %641, %v588
  %v643 = vpop.permute.xlu0 %642
  %646 = vset.pattern.permute.xlu0 0
  %647 = vperm.xlu0 %646, %v589
  %v648 = vpop.permute.xlu0 %647
  %651 = vset.pattern.permute.xlu0 0
  %652 = vperm.xlu0 %651, %v590
  %v653 = vpop.permute.xlu0 %652
  %656 = vset.pattern.permute.xlu0 0
  %657 = vperm.xlu0 %656, %v591
  %v658 = vpop.permute.xlu0 %657
  %661 = vset.pattern.permute.xlu0 0
  %662 = vperm.xlu0 %661, %v592
  %v663 = vpop.permute.xlu0 %662
  %666 = vset.pattern.permute.xlu0 0
  %667 = vperm.xlu0 %666, %v593
  %v668 = vpop.permute.xlu0 %667
  %671 = vset.pattern.permute.xlu0 0
  %672 = vperm.xlu0 %671, %v594
  %v673 = vpop.permute.xlu0 %672
  %676 = vset.pattern.permute.xlu0 0
  %677 = vperm.xlu0 %676, %v595
  %v678 = vpop.permute.xlu0 %677
  %681 = vset.pattern.permute.xlu0 0
  %682 = vperm.xlu0 %681, %v596
  %v683 = vpop.permute.xlu0 %682
  %686 = vset.pattern.permute.xlu0 0
  %687 = vperm.xlu0 %686, %v597
  %v688 = vpop.permute.xlu0 %687
  %691 = vset.pattern.permute.xlu0 0
  %692 = vperm.xlu0 %691, %v598
  %v693 = vpop.permute.xlu0 %692
  %696 = vset.pattern.permute.xlu0 0
  %697 = vperm.xlu0 %696, %v599
  %v698 = vpop.permute.xlu0 %697
  %v720 = vunpack.c.l.b16 %v555
  %v721 = vunpack.c.l.b16 %v556
  %v722 = vunpack.c.l.b16 %v557
  %v723 = vunpack.c.l.b16 %v558
  %v724 = vunpack.c.l.b16 %v559
  %v725 = vunpack.c.l.b16 %v560
  %v726 = vunpack.c.l.b16 %v561
  %v727 = vunpack.c.l.b16 %v562
  %v728 = vunpack.c.l.b16 %v563
  %v729 = vunpack.c.l.b16 %v564
  %v730 = vunpack.c.l.b16 %v565
  %v731 = vunpack.c.l.b16 %v566
  %v732 = vunpack.c.l.b16 %v567
  %v733 = vunpack.c.l.b16 %v568
  %v734 = vunpack.c.l.b16 %v569
  %v735 = vunpack.c.l.b16 %v570
  %v736 = vunpack.c.l.b16 %v571
  %v737 = vunpack.c.l.b16 %v572
  %v738 = vunpack.c.l.b16 %v573
  %v739 = vunpack.c.l.b16 %v574
  %v740 = vpack.c.b16 %v721, %v720
  %v741 = vpack.c.b16 %v723, %v722
  %v742 = vpack.c.b16 %v725, %v724
  %v743 = vpack.c.b16 %v727, %v726
  %v744 = vpack.c.b16 %v729, %v728
  %v745 = vpack.c.b16 %v731, %v730
  %v746 = vpack.c.b16 %v733, %v732
  %v747 = vpack.c.b16 %v735, %v734
  %v748 = vpack.c.b16 %v737, %v736
  %v749 = vpack.c.b16 %v739, %v738
  %vm750 = vcmask 654336
  %v752 = vsel %vm750, %v740, 0
  %v755 = vsel %vm750, %v741, 0
  %v758 = vsel %vm750, %v742, 0
  %v761 = vsel %vm750, %v743, 0
  %v764 = vsel %vm750, %v744, 0
  %v767 = vsel %vm750, %v745, 0
  %v770 = vsel %vm750, %v746, 0
  %v773 = vsel %vm750, %v747, 0
  %v776 = vsel %vm750, %v748, 0
  %v779 = vsel %vm750, %v749, 0
  %781 = vmatprep.subr.bf16.mxu0 0
  %782 = vmatpush1.bf16.msra.mxu0 %v575
  %783 = vmatprep.subr.bf16.mxu0 0
  %784 = vmatpush1.bf16.msra.mxu0 %v576
  %785 = vmatprep.subr.bf16.mxu0 0
  %786 = vmatpush1.bf16.msra.mxu0 %v577
  %787 = vmatprep.subr.bf16.mxu0 0
  %788 = vmatpush1.bf16.msra.mxu0 %v578
  %789 = vmatprep.subr.bf16.mxu0 0
  %790 = vmatpush1.bf16.msra.mxu0 %v579
  %791 = vmatprep.subr.bf16.mxu0 0
  %792 = vmatpush1.bf16.msra.mxu0 0
  %793 = vmatprep.subr.bf16.mxu0 0
  %794 = vmatpush1.bf16.msra.mxu0 0
  %795 = vmatprep.subr.bf16.mxu0 0
  %796 = vmatpush1.bf16.msra.mxu0 0
  %797 = vmatprep.subr.bf16.mxu0 0
  %798 = vmatpush1.bf16.msra.mxu0 0
  %799 = vmatprep.subr.bf16.mxu0 0
  %800 = vmatpush1.bf16.msra.mxu0 0
  %801 = vmatprep.subr.bf16.mxu0 0
  %802 = vmatpush1.bf16.msra.mxu0 0
  %803 = vmatprep.subr.bf16.mxu0 0
  %804 = vmatpush1.bf16.msra.mxu0 0
  %805 = vmatprep.subr.bf16.mxu0 0
  %806 = vmatpush1.bf16.msra.mxu0 0
  %807 = vmatprep.subr.bf16.mxu0 0
  %808 = vmatpush1.bf16.msra.mxu0 0
  %809 = vmatprep.subr.bf16.mxu0 0
  %810 = vmatpush1.bf16.msra.mxu0 0
  %811 = vmatprep.subr.bf16.mxu0 0
  %812 = vmatpush1.bf16.msra.mxu0 0
  %813 = vmatprep.mubr.bf16.mxu0 0
  %814 = vmatmul.mubr.bf16.gmra.mrb[0].mxu0 %v752
  %v815 = vpop.f32.mrb[0].mxu0
  %v816 = vadd.f32 %v603, %v815
  %v817 = vpop.f32.mrb[0].mxu0
  %v818 = vpop.f32.mrb[0].mxu0
  %v819 = vadd.f32 %v608, %v818
  %v820 = vpop.f32.mrb[0].mxu0
  %821 = vmatprep.mubr.bf16.mxu0 0
  %822 = vmatmul.mubr.bf16.gmra.mrb[0].mxu0 %v755
  %v823 = vpop.f32.mrb[0].mxu0
  %v824 = vadd.f32 %v613, %v823
  %v825 = vpop.f32.mrb[0].mxu0
  %v826 = vpop.f32.mrb[0].mxu0
  %v827 = vadd.f32 %v618, %v826
  %v828 = vpop.f32.mrb[0].mxu0
  %829 = vmatprep.mubr.bf16.mxu0 0
  %830 = vmatmul.mubr.bf16.gmra.mrb[0].mxu0 %v758
  %v831 = vpop.f32.mrb[0].mxu0
  %v832 = vadd.f32 %v623, %v831
  %v833 = vpop.f32.mrb[0].mxu0
  %v834 = vpop.f32.mrb[0].mxu0
  %v835 = vadd.f32 %v628, %v834
  %v836 = vpop.f32.mrb[0].mxu0
  %837 = vmatprep.mubr.bf16.mxu0 0
  %838 = vmatmul.mubr.bf16.gmra.mrb[0].mxu0 %v761
  %v839 = vpop.f32.mrb[0].mxu0
  %v840 = vadd.f32 %v633, %v839
  %v841 = vpop.f32.mrb[0].mxu0
  %v842 = vpop.f32.mrb[0].mxu0
  %v843 = vadd.f32 %v638, %v842
  %v844 = vpop.f32.mrb[0].mxu0
  %845 = vmatprep.mubr.bf16.mxu0 0
  %846 = vmatmul.mubr.bf16.gmra.mrb[0].mxu0 %v764
  %v847 = vpop.f32.mrb[0].mxu0
  %v848 = vadd.f32 %v643, %v847
  %v849 = vpop.f32.mrb[0].mxu0
  %v850 = vpop.f32.mrb[0].mxu0
  %v851 = vadd.f32 %v648, %v850
  %v852 = vpop.f32.mrb[0].mxu0
  %853 = vmatprep.mubr.bf16.mxu0 0
  %854 = vmatmul.mubr.bf16.gmra.mrb[0].mxu0 %v767
  %v855 = vpop.f32.mrb[0].mxu0
  %v856 = vadd.f32 %v653, %v855
  %v857 = vpop.f32.mrb[0].mxu0
  %v858 = vpop.f32.mrb[0].mxu0
  %v859 = vadd.f32 %v658, %v858
  %v860 = vpop.f32.mrb[0].mxu0
  %861 = vmatprep.mubr.bf16.mxu0 0
  %862 = vmatmul.mubr.bf16.gmra.mrb[0].mxu0 %v770
  %v863 = vpop.f32.mrb[0].mxu0
  %v864 = vadd.f32 %v663, %v863
  %v865 = vpop.f32.mrb[0].mxu0
  %v866 = vpop.f32.mrb[0].mxu0
  %v867 = vadd.f32 %v668, %v866
  %v868 = vpop.f32.mrb[0].mxu0
  %869 = vmatprep.mubr.bf16.mxu0 0
  %870 = vmatmul.mubr.bf16.gmra.mrb[0].mxu0 %v773
  %v871 = vpop.f32.mrb[0].mxu0
  %v872 = vadd.f32 %v673, %v871
  %v873 = vpop.f32.mrb[0].mxu0
  %v874 = vpop.f32.mrb[0].mxu0
  %v875 = vadd.f32 %v678, %v874
  %v876 = vpop.f32.mrb[0].mxu0
  %877 = vmatprep.mubr.bf16.mxu0 0
  %878 = vmatmul.mubr.bf16.gmra.mrb[0].mxu0 %v776
  %v879 = vpop.f32.mrb[0].mxu0
  %v880 = vadd.f32 %v683, %v879
  %v881 = vpop.f32.mrb[0].mxu0
  %v882 = vpop.f32.mrb[0].mxu0
  %v883 = vadd.f32 %v688, %v882
  %v884 = vpop.f32.mrb[0].mxu0
  %885 = vmatprep.mubr.bf16.mxu0 0
  %886 = vmatmul.mubr.bf16.gmra.mrb[0].mxu0 %v779
  %v887 = vpop.f32.mrb[0].mxu0
  %v888 = vadd.f32 %v693, %v887
  %v889 = vpop.f32.mrb[0].mxu0
  %v890 = vpop.f32.mrb[0].mxu0
  %v891 = vadd.f32 %v698, %v890
  %v892 = vpop.f32.mrb[0].mxu0
  %893 = vdwg.mxu0
  %vm894 = vcmp.ge.f32.partialorder %v816, 0.0
  %vm895 = vcmp.ge.f32.partialorder %v819, 0.0
  %vm896 = vcmp.ge.f32.partialorder %v824, 0.0
  %vm897 = vcmp.ge.f32.partialorder %v827, 0.0
  %vm898 = vcmp.ge.f32.partialorder %v832, 0.0
  %vm899 = vcmp.ge.f32.partialorder %v835, 0.0
  %vm900 = vcmp.ge.f32.partialorder %v840, 0.0
  %vm901 = vcmp.ge.f32.partialorder %v843, 0.0
  %vm902 = vcmp.ge.f32.partialorder %v848, 0.0
  %vm903 = vcmp.ge.f32.partialorder %v851, 0.0
  %vm904 = vcmp.ge.f32.partialorder %v856, 0.0
  %vm905 = vcmp.ge.f32.partialorder %v859, 0.0
  %vm906 = vcmp.ge.f32.partialorder %v864, 0.0
  %vm907 = vcmp.ge.f32.partialorder %v867, 0.0
  %vm908 = vcmp.ge.f32.partialorder %v872, 0.0
  %vm909 = vcmp.ge.f32.partialorder %v875, 0.0
  %vm910 = vcmp.ge.f32.partialorder %v880, 0.0
  %vm911 = vcmp.ge.f32.partialorder %v883, 0.0
  %vm912 = vcmp.ge.f32.partialorder %v888, 0.0
  %vm913 = vcmp.ge.f32.partialorder %v891, 0.0
  %v914 = vmul.f32 %v816, 0.01
  %v915 = vmul.f32 %v819, 0.01
  %v916 = vmul.f32 %v824, 0.01
  %v917 = vmul.f32 %v827, 0.01
  %v918 = vmul.f32 %v832, 0.01
  %v919 = vmul.f32 %v835, 0.01
  %v920 = vmul.f32 %v840, 0.01
  %v921 = vmul.f32 %v843, 0.01
  %v922 = vmul.f32 %v848, 0.01
  %v923 = vmul.f32 %v851, 0.01
  %v924 = vmul.f32 %v856, 0.01
  %v925 = vmul.f32 %v859, 0.01
  %v926 = vmul.f32 %v864, 0.01
  %v927 = vmul.f32 %v867, 0.01
  %v928 = vmul.f32 %v872, 0.01
  %v929 = vmul.f32 %v875, 0.01
  %v930 = vmul.f32 %v880, 0.01
  %v931 = vmul.f32 %v883, 0.01
  %v932 = vmul.f32 %v888, 0.01
  %v933 = vmul.f32 %v891, 0.01
  %v934 = vsel %vm894, %v816, %v914
  %v935 = vsel %vm895, %v819, %v915
  %v936 = vsel %vm896, %v824, %v916
  %v937 = vsel %vm897, %v827, %v917
  %v938 = vsel %vm898, %v832, %v918
  %v939 = vsel %vm899, %v835, %v919
  %v940 = vsel %vm900, %v840, %v920
  %v941 = vsel %vm901, %v843, %v921
  %v942 = vsel %vm902, %v848, %v922
  %v943 = vsel %vm903, %v851, %v923
  %v944 = vsel %vm904, %v856, %v924
  %v945 = vsel %vm905, %v859, %v925
  %v946 = vsel %vm906, %v864, %v926
  %v947 = vsel %vm907, %v867, %v927
  %v948 = vsel %vm908, %v872, %v928
  %v949 = vsel %vm909, %v875, %v929
  %v950 = vsel %vm910, %v880, %v930
  %v951 = vsel %vm911, %v883, %v931
  %v952 = vsel %vm912, %v888, %v932
  %v953 = vsel %vm913, %v891, %v933
  %v954 = vld [vmem:[%s4] sm:$0xff]
  %v955 = vld [vmem:[%s4 + $0x8] sm:$0xff]
  %v956 = vld [vmem:[%s4 + $0x10] sm:$0xff]
  %v957 = vld [vmem:[%s4 + $0x18] sm:$0xff]
  %v958 = vld [vmem:[%s4 + $0x20] sm:$0xff]
  %v959 = vld [vmem:[%s4 + $0x28] sm:$0xff]
  %v960 = vld [vmem:[%s4 + $0x30] sm:$0xff]
  %v961 = vld [vmem:[%s4 + $0x38] sm:$0xff]
  %v962 = vld [vmem:[%s4 + $0x40] sm:$0xff]
  %v963 = vld [vmem:[%s4 + $0x48] sm:$0xff]
  %v964 = vld [vmem:[%s4 + $0x50] sm:$0xff]
  %v965 = vld [vmem:[%s4 + $0x58] sm:$0xff]
  %v966 = vld [vmem:[%s4 + $0x60] sm:$0xff]
  %v967 = vld [vmem:[%s4 + $0x68] sm:$0xff]
  %v968 = vld [vmem:[%s4 + $0x70] sm:$0xff]
  %v969 = vld [vmem:[%s4 + $0x78] sm:$0xff]
  %v970 = vld [vmem:[%s4 + $0x80] sm:$0xff]
  %v971 = vld [vmem:[%s4 + $0x88] sm:$0xff]
  %v972 = vld [vmem:[%s4 + $0x90] sm:$0xff]
  %v973 = vld [vmem:[%s4 + $0x98] sm:$0xff]
  %v974 = vpack.c.bf16 %v935, %v934
  %v975 = vpack.c.bf16 %v937, %v936
  %v976 = vpack.c.bf16 %v939, %v938
  %v977 = vpack.c.bf16 %v941, %v940
  %v978 = vpack.c.bf16 %v943, %v942
  %v979 = vpack.c.bf16 %v945, %v944
  %v980 = vpack.c.bf16 %v947, %v946
  %v981 = vpack.c.bf16 %v949, %v948
  %v982 = vpack.c.bf16 %v951, %v950
  %v983 = vpack.c.bf16 %v953, %v952
  %v984 = vld [vmem:[%s5] sm:$0xff]
  %v985 = vld [vmem:[%s5 + $0x8] sm:$0xff]
  %v986 = vld [vmem:[%s5 + $0x10] sm:$0xff]
  %v987 = vld [vmem:[%s5 + $0x18] sm:$0xff]
  %v988 = vld [vmem:[%s5 + $0x20] sm:$0xff]
  %v989 = vld [vmem:[%s5 + $0x28] sm:$0xff]
  %v990 = vld [vmem:[%s5 + $0x30] sm:$0xff]
  %v991 = vld [vmem:[%s5 + $0x38] sm:$0xff]
  %v992 = vld [vmem:[%s5 + $0x40] sm:$0xff]
  %v993 = vld [vmem:[%s5 + $0x48] sm:$0xff]
  %v994 = vld [vmem:[%s5 + $0x50] sm:$0xff]
  %v995 = vld [vmem:[%s5 + $0x58] sm:$0xff]
  %v996 = vld [vmem:[%s5 + $0x60] sm:$0xff]
  %v997 = vld [vmem:[%s5 + $0x68] sm:$0xff]
  %v998 = vld [vmem:[%s5 + $0x70] sm:$0xff]
  %v999 = vld [vmem:[%s5 + $0x78] sm:$0xff]
  %v1000 = vld [vmem:[%s5 + $0x80] sm:$0xff]
  %v1001 = vld [vmem:[%s5 + $0x88] sm:$0xff]
  %v1002 = vld [vmem:[%s5 + $0x90] sm:$0xff]
  %v1003 = vld [vmem:[%s5 + $0x98] sm:$0xff]
  %1005 = vset.pattern.permute.xlu0 0
  %1006 = vperm.xlu0 %1005, %v984
  %v1007 = vpop.permute.xlu0 %1006
  %1010 = vset.pattern.permute.xlu0 0
  %1011 = vperm.xlu0 %1010, %v985
  %v1012 = vpop.permute.xlu0 %1011
  %1015 = vset.pattern.permute.xlu0 0
  %1016 = vperm.xlu0 %1015, %v986
  %v1017 = vpop.permute.xlu0 %1016
  %1020 = vset.pattern.permute.xlu0 0
  %1021 = vperm.xlu0 %1020, %v987
  %v1022 = vpop.permute.xlu0 %1021
  %1025 = vset.pattern.permute.xlu0 0
  %1026 = vperm.xlu0 %1025, %v988
  %v1027 = vpop.permute.xlu0 %1026
  %1030 = vset.pattern.permute.xlu0 0
  %1031 = vperm.xlu0 %1030, %v989
  %v1032 = vpop.permute.xlu0 %1031
  %1035 = vset.pattern.permute.xlu0 0
  %1036 = vperm.xlu0 %1035, %v990
  %v1037 = vpop.permute.xlu0 %1036
  %1040 = vset.pattern.permute.xlu0 0
  %1041 = vperm.xlu0 %1040, %v991
  %v1042 = vpop.permute.xlu0 %1041
  %1045 = vset.pattern.permute.xlu0 0
  %1046 = vperm.xlu0 %1045, %v992
  %v1047 = vpop.permute.xlu0 %1046
  %1050 = vset.pattern.permute.xlu0 0
  %1051 = vperm.xlu0 %1050, %v993
  %v1052 = vpop.permute.xlu0 %1051
  %1055 = vset.pattern.permute.xlu0 0
  %1056 = vperm.xlu0 %1055, %v994
  %v1057 = vpop.permute.xlu0 %1056
  %1060 = vset.pattern.permute.xlu0 0
  %1061 = vperm.xlu0 %1060, %v995
  %v1062 = vpop.permute.xlu0 %1061
  %1065 = vset.pattern.permute.xlu0 0
  %1066 = vperm.xlu0 %1065, %v996
  %v1067 = vpop.permute.xlu0 %1066
  %1070 = vset.pattern.permute.xlu0 0
  %1071 = vperm.xlu0 %1070, %v997
  %v1072 = vpop.permute.xlu0 %1071
  %1075 = vset.pattern.permute.xlu0 0
  %1076 = vperm.xlu0 %1075, %v998
  %v1077 = vpop.permute.xlu0 %1076
  %1080 = vset.pattern.permute.xlu0 0
  %1081 = vperm.xlu0 %1080, %v999
  %v1082 = vpop.permute.xlu0 %1081
  %1085 = vset.pattern.permute.xlu0 0
  %1086 = vperm.xlu0 %1085, %v1000
  %v1087 = vpop.permute.xlu0 %1086
  %1090 = vset.pattern.permute.xlu0 0
  %1091 = vperm.xlu0 %1090, %v1001
  %v1092 = vpop.permute.xlu0 %1091
  %1095 = vset.pattern.permute.xlu0 0
  %1096 = vperm.xlu0 %1095, %v1002
  %v1097 = vpop.permute.xlu0 %1096
  %1100 = vset.pattern.permute.xlu0 0
  %1101 = vperm.xlu0 %1100, %v1003
  %v1102 = vpop.permute.xlu0 %1101
  %v1124 = vunpack.c.l.b16 %v954
  %v1125 = vunpack.c.h.b16 %v954
  %v1126 = vunpack.c.l.b16 %v955
  %v1127 = vunpack.c.h.b16 %v955
  %v1128 = vunpack.c.l.b16 %v956
  %v1129 = vunpack.c.h.b16 %v956
  %v1130 = vunpack.c.l.b16 %v957
  %v1131 = vunpack.c.h.b16 %v957
  %v1132 = vunpack.c.l.b16 %v958
  %v1133 = vunpack.c.h.b16 %v958
  %v1134 = vunpack.c.l.b16 %v959
  %v1135 = vunpack.c.h.b16 %v959
  %v1136 = vunpack.c.l.b16 %v960
  %v1137 = vunpack.c.h.b16 %v960
  %v1138 = vunpack.c.l.b16 %v961
  %v1139 = vunpack.c.h.b16 %v961
  %v1140 = vunpack.c.l.b16 %v962
  %v1141 = vunpack.c.h.b16 %v962
  %v1142 = vunpack.c.l.b16 %v963
  %v1143 = vunpack.c.h.b16 %v963
  %v1144 = vunpack.c.l.b16 %v964
  %v1145 = vunpack.c.h.b16 %v964
  %v1146 = vunpack.c.l.b16 %v965
  %v1147 = vunpack.c.h.b16 %v965
  %v1148 = vunpack.c.l.b16 %v966
  %v1149 = vunpack.c.h.b16 %v966
  %v1150 = vunpack.c.l.b16 %v967
  %v1151 = vunpack.c.h.b16 %v967
  %v1152 = vunpack.c.l.b16 %v968
  %v1153 = vunpack.c.h.b16 %v968
  %v1154 = vunpack.c.l.b16 %v969
  %v1155 = vunpack.c.h.b16 %v969
  %v1156 = vunpack.c.l.b16 %v970
  %v1157 = vunpack.c.h.b16 %v970
  %v1158 = vunpack.c.l.b16 %v971
  %v1159 = vunpack.c.h.b16 %v971
  %v1160 = vunpack.c.l.b16 %v972
  %v1161 = vunpack.c.h.b16 %v972
  %v1162 = vunpack.c.l.b16 %v973
  %v1163 = vunpack.c.h.b16 %v973
  %v1164 = vpack.c.b16 %v1126, %v1124
  %v1165 = vpack.c.b16 %v1127, %v1125
  %v1166 = vpack.c.b16 %v1130, %v1128
  %v1167 = vpack.c.b16 %v1131, %v1129
  %v1168 = vpack.c.b16 %v1134, %v1132
  %v1169 = vpack.c.b16 %v1135, %v1133
  %v1170 = vpack.c.b16 %v1138, %v1136
  %v1171 = vpack.c.b16 %v1139, %v1137
  %v1172 = vpack.c.b16 %v1142, %v1140
  %v1173 = vpack.c.b16 %v1143, %v1141
  %v1174 = vpack.c.b16 %v1146, %v1144
  %v1175 = vpack.c.b16 %v1147, %v1145
  %v1176 = vpack.c.b16 %v1150, %v1148
  %v1177 = vpack.c.b16 %v1151, %v1149
  %v1178 = vpack.c.b16 %v1154, %v1152
  %v1179 = vpack.c.b16 %v1155, %v1153
  %v1180 = vpack.c.b16 %v1158, %v1156
  %v1181 = vpack.c.b16 %v1159, %v1157
  %v1182 = vpack.c.b16 %v1162, %v1160
  %v1183 = vpack.c.b16 %v1163, %v1161
  %vm1194 = vcmask 261120
  %v1196 = vsel %vm1194, %v1165, 0
  %v1199 = vsel %vm1194, %v1167, 0
  %v1202 = vsel %vm1194, %v1169, 0
  %v1205 = vsel %vm1194, %v1171, 0
  %v1208 = vsel %vm1194, %v1173, 0
  %v1211 = vsel %vm1194, %v1175, 0
  %v1214 = vsel %vm1194, %v1177, 0
  %v1217 = vsel %vm1194, %v1179, 0
  %v1220 = vsel %vm1194, %v1181, 0
  %v1223 = vsel %vm1194, %v1183, 0
  %1225 = vmatprep.subr.bf16.mxu0 0
  %1226 = vmatpush1.bf16.msra.mxu0 %v974
  %1227 = vmatprep.subr.bf16.mxu0 0
  %1228 = vmatpush1.bf16.msra.mxu0 %v975
  %1229 = vmatprep.subr.bf16.mxu0 0
  %1230 = vmatpush1.bf16.msra.mxu0 %v976
  %1231 = vmatprep.subr.bf16.mxu0 0
  %1232 = vmatpush1.bf16.msra.mxu0 %v977
  %1233 = vmatprep.subr.bf16.mxu0 0
  %1234 = vmatpush1.bf16.msra.mxu0 %v978
  %1235 = vmatprep.subr.bf16.mxu0 0
  %1236 = vmatpush1.bf16.msra.mxu0 %v979
  %1237 = vmatprep.subr.bf16.mxu0 0
  %1238 = vmatpush1.bf16.msra.mxu0 %v980
  %1239 = vmatprep.subr.bf16.mxu0 0
  %1240 = vmatpush1.bf16.msra.mxu0 %v981
  %1241 = vmatprep.subr.bf16.mxu0 0
  %1242 = vmatpush1.bf16.msra.mxu0 %v982
  %1243 = vmatprep.subr.bf16.mxu0 0
  %1244 = vmatpush1.bf16.msra.mxu0 %v983
  %1245 = vmatprep.subr.bf16.mxu0 0
  %1246 = vmatpush1.bf16.msra.mxu0 0
  %1247 = vmatprep.subr.bf16.mxu0 0
  %1248 = vmatpush1.bf16.msra.mxu0 0
  %1249 = vmatprep.subr.bf16.mxu0 0
  %1250 = vmatpush1.bf16.msra.mxu0 0
  %1251 = vmatprep.subr.bf16.mxu0 0
  %1252 = vmatpush1.bf16.msra.mxu0 0
  %1253 = vmatprep.subr.bf16.mxu0 0
  %1254 = vmatpush1.bf16.msra.mxu0 0
  %1255 = vmatprep.subr.bf16.mxu0 0
  %1256 = vmatpush1.bf16.msra.mxu0 0
  %1257 = vmatprep.mubr.bf16.mxu0 %v1196
  %1258 = vmatmul.mubr.bf16.gmra.mrb[0].mxu0 %v1164
  %v1259 = vpop.f32.mrb[0].mxu0
  %v1260 = vadd.f32 %v1007, %v1259
  %v1261 = vpop.f32.mrb[0].mxu0
  %v1262 = vpop.f32.mrb[0].mxu0
  %v1263 = vadd.f32 %v1012, %v1262
  %v1264 = vpop.f32.mrb[0].mxu0
  %1265 = vmatprep.mubr.bf16.mxu0 %v1199
  %1266 = vmatmul.mubr.bf16.gmra.mrb[0].mxu0 %v1166
  %v1267 = vpop.f32.mrb[0].mxu0
  %v1268 = vadd.f32 %v1017, %v1267
  %v1269 = vpop.f32.mrb[0].mxu0
  %v1270 = vpop.f32.mrb[0].mxu0
  %v1271 = vadd.f32 %v1022, %v1270
  %v1272 = vpop.f32.mrb[0].mxu0
  %1273 = vmatprep.mubr.bf16.mxu0 %v1202
  %1274 = vmatmul.mubr.bf16.gmra.mrb[0].mxu0 %v1168
  %v1275 = vpop.f32.mrb[0].mxu0
  %v1276 = vadd.f32 %v1027, %v1275
  %v1277 = vpop.f32.mrb[0].mxu0
  %v1278 = vpop.f32.mrb[0].mxu0
  %v1279 = vadd.f32 %v1032, %v1278
  %v1280 = vpop.f32.mrb[0].mxu0
  %1281 = vmatprep.mubr.bf16.mxu0 %v1205
  %1282 = vmatmul.mubr.bf16.gmra.mrb[0].mxu0 %v1170
  %v1283 = vpop.f32.mrb[0].mxu0
  %v1284 = vadd.f32 %v1037, %v1283
  %v1285 = vpop.f32.mrb[0].mxu0
  %v1286 = vpop.f32.mrb[0].mxu0
  %v1287 = vadd.f32 %v1042, %v1286
  %v1288 = vpop.f32.mrb[0].mxu0
  %1289 = vmatprep.mubr.bf16.mxu0 %v1208
  %1290 = vmatmul.mubr.bf16.gmra.mrb[0].mxu0 %v1172
  %v1291 = vpop.f32.mrb[0].mxu0
  %v1292 = vadd.f32 %v1047, %v1291
  %v1293 = vpop.f32.mrb[0].mxu0
  %v1294 = vpop.f32.mrb[0].mxu0
  %v1295 = vadd.f32 %v1052, %v1294
  %v1296 = vpop.f32.mrb[0].mxu0
  %1297 = vmatprep.mubr.bf16.mxu0 %v1211
  %1298 = vmatmul.mubr.bf16.gmra.mrb[0].mxu0 %v1174
  %v1299 = vpop.f32.mrb[0].mxu0
  %v1300 = vadd.f32 %v1057, %v1299
  %v1301 = vpop.f32.mrb[0].mxu0
  %v1302 = vpop.f32.mrb[0].mxu0
  %v1303 = vadd.f32 %v1062, %v1302
  %v1304 = vpop.f32.mrb[0].mxu0
  %1305 = vmatprep.mubr.bf16.mxu0 %v1214
  %1306 = vmatmul.mubr.bf16.gmra.mrb[0].mxu0 %v1176
  %v1307 = vpop.f32.mrb[0].mxu0
  %v1308 = vadd.f32 %v1067, %v1307
  %v1309 = vpop.f32.mrb[0].mxu0
  %v1310 = vpop.f32.mrb[0].mxu0
  %v1311 = vadd.f32 %v1072, %v1310
  %v1312 = vpop.f32.mrb[0].mxu0
  %1313 = vmatprep.mubr.bf16.mxu0 %v1217
  %1314 = vmatmul.mubr.bf16.gmra.mrb[0].mxu0 %v1178
  %v1315 = vpop.f32.mrb[0].mxu0
  %v1316 = vadd.f32 %v1077, %v1315
  %v1317 = vpop.f32.mrb[0].mxu0
  %v1318 = vpop.f32.mrb[0].mxu0
  %v1319 = vadd.f32 %v1082, %v1318
  %v1320 = vpop.f32.mrb[0].mxu0
  %1321 = vmatprep.mubr.bf16.mxu0 %v1220
  %1322 = vmatmul.mubr.bf16.gmra.mrb[0].mxu0 %v1180
  %v1323 = vpop.f32.mrb[0].mxu0
  %v1324 = vadd.f32 %v1087, %v1323
  %v1325 = vpop.f32.mrb[0].mxu0
  %v1326 = vpop.f32.mrb[0].mxu0
  %v1327 = vadd.f32 %v1092, %v1326
  %v1328 = vpop.f32.mrb[0].mxu0
  %1329 = vmatprep.mubr.bf16.mxu0 %v1223
  %1330 = vmatmul.mubr.bf16.gmra.mrb[0].mxu0 %v1182
  %v1331 = vpop.f32.mrb[0].mxu0
  %v1332 = vadd.f32 %v1097, %v1331
  %v1333 = vpop.f32.mrb[0].mxu0
  %v1334 = vpop.f32.mrb[0].mxu0
  %v1335 = vadd.f32 %v1102, %v1334
  %v1336 = vpop.f32.mrb[0].mxu0
  %1337 = vdwg.mxu0
  %vm1338 = vcmp.ge.f32.partialorder %v1260, 0.0
  %vm1339 = vcmp.ge.f32.partialorder %v1263, 0.0
  %vm1340 = vcmp.ge.f32.partialorder %v1268, 0.0
  %vm1341 = vcmp.ge.f32.partialorder %v1271, 0.0
  %vm1342 = vcmp.ge.f32.partialorder %v1276, 0.0
  %vm1343 = vcmp.ge.f32.partialorder %v1279, 0.0
  %vm1344 = vcmp.ge.f32.partialorder %v1284, 0.0
  %vm1345 = vcmp.ge.f32.partialorder %v1287, 0.0
  %vm1346 = vcmp.ge.f32.partialorder %v1292, 0.0
  %vm1347 = vcmp.ge.f32.partialorder %v1295, 0.0
  %vm1348 = vcmp.ge.f32.partialorder %v1300, 0.0
  %vm1349 = vcmp.ge.f32.partialorder %v1303, 0.0
  %vm1350 = vcmp.ge.f32.partialorder %v1308, 0.0
  %vm1351 = vcmp.ge.f32.partialorder %v1311, 0.0
  %vm1352 = vcmp.ge.f32.partialorder %v1316, 0.0
  %vm1353 = vcmp.ge.f32.partialorder %v1319, 0.0
  %vm1354 = vcmp.ge.f32.partialorder %v1324, 0.0
  %vm1355 = vcmp.ge.f32.partialorder %v1327, 0.0
  %vm1356 = vcmp.ge.f32.partialorder %v1332, 0.0
  %vm1357 = vcmp.ge.f32.partialorder %v1335, 0.0
  %v1358 = vmul.f32 %v1260, 0.01
  %v1359 = vmul.f32 %v1263, 0.01
  %v1360 = vmul.f32 %v1268, 0.01
  %v1361 = vmul.f32 %v1271, 0.01
  %v1362 = vmul.f32 %v1276, 0.01
  %v1363 = vmul.f32 %v1279, 0.01
  %v1364 = vmul.f32 %v1284, 0.01
  %v1365 = vmul.f32 %v1287, 0.01
  %v1366 = vmul.f32 %v1292, 0.01
  %v1367 = vmul.f32 %v1295, 0.01
  %v1368 = vmul.f32 %v1300, 0.01
  %v1369 = vmul.f32 %v1303, 0.01
  %v1370 = vmul.f32 %v1308, 0.01
  %v1371 = vmul.f32 %v1311, 0.01
  %v1372 = vmul.f32 %v1316, 0.01
  %v1373 = vmul.f32 %v1319, 0.01
  %v1374 = vmul.f32 %v1324, 0.01
  %v1375 = vmul.f32 %v1327, 0.01
  %v1376 = vmul.f32 %v1332, 0.01
  %v1377 = vmul.f32 %v1335, 0.01
  %v1378 = vsel %vm1338, %v1260, %v1358
  %v1379 = vsel %vm1339, %v1263, %v1359
  %v1380 = vsel %vm1340, %v1268, %v1360
  %v1381 = vsel %vm1341, %v1271, %v1361
  %v1382 = vsel %vm1342, %v1276, %v1362
  %v1383 = vsel %vm1343, %v1279, %v1363
  %v1384 = vsel %vm1344, %v1284, %v1364
  %v1385 = vsel %vm1345, %v1287, %v1365
  %v1386 = vsel %vm1346, %v1292, %v1366
  %v1387 = vsel %vm1347, %v1295, %v1367
  %v1388 = vsel %vm1348, %v1300, %v1368
  %v1389 = vsel %vm1349, %v1303, %v1369
  %v1390 = vsel %vm1350, %v1308, %v1370
  %v1391 = vsel %vm1351, %v1311, %v1371
  %v1392 = vsel %vm1352, %v1316, %v1372
  %v1393 = vsel %vm1353, %v1319, %v1373
  %v1394 = vsel %vm1354, %v1324, %v1374
  %v1395 = vsel %vm1355, %v1327, %v1375
  %v1396 = vsel %vm1356, %v1332, %v1376
  %v1397 = vsel %vm1357, %v1335, %v1377
  %v1398 = vld [vmem:[%s6] sm:$0xff]
  %v1399 = vld [vmem:[%s6 + $0x8] sm:$0xff]
  %v1400 = vld [vmem:[%s6 + $0x10] sm:$0xff]
  %v1401 = vld [vmem:[%s6 + $0x18] sm:$0xff]
  %v1402 = vld [vmem:[%s6 + $0x20] sm:$0xff]
  %v1403 = vld [vmem:[%s6 + $0x28] sm:$0xff]
  %v1404 = vld [vmem:[%s6 + $0x30] sm:$0xff]
  %v1405 = vld [vmem:[%s6 + $0x38] sm:$0xff]
  %v1406 = vld [vmem:[%s6 + $0x40] sm:$0xff]
  %v1407 = vld [vmem:[%s6 + $0x48] sm:$0xff]
  %v1408 = vld [vmem:[%s6 + $0x50] sm:$0xff]
  %v1409 = vld [vmem:[%s6 + $0x58] sm:$0xff]
  %v1410 = vld [vmem:[%s6 + $0x60] sm:$0xff]
  %v1411 = vld [vmem:[%s6 + $0x68] sm:$0xff]
  %v1412 = vld [vmem:[%s6 + $0x70] sm:$0xff]
  %v1413 = vld [vmem:[%s6 + $0x78] sm:$0xff]
  %v1414 = vld [vmem:[%s6 + $0x80] sm:$0xff]
  %v1415 = vld [vmem:[%s6 + $0x88] sm:$0xff]
  %v1416 = vld [vmem:[%s6 + $0x90] sm:$0xff]
  %v1417 = vld [vmem:[%s6 + $0x98] sm:$0xff]
  %v1418 = vpack.c.bf16 %v1379, %v1378
  %v1419 = vpack.c.bf16 %v1381, %v1380
  %v1420 = vpack.c.bf16 %v1383, %v1382
  %v1421 = vpack.c.bf16 %v1385, %v1384
  %v1422 = vpack.c.bf16 %v1387, %v1386
  %v1423 = vpack.c.bf16 %v1389, %v1388
  %v1424 = vpack.c.bf16 %v1391, %v1390
  %v1425 = vpack.c.bf16 %v1393, %v1392
  %v1426 = vpack.c.bf16 %v1395, %v1394
  %v1427 = vpack.c.bf16 %v1397, %v1396
  %v1428 = vld [vmem:[%s7] sm:$0xff]
  %v1429 = vld [vmem:[%s7 + $0x8] sm:$0xff]
  %v1430 = vld [vmem:[%s7 + $0x10] sm:$0xff]
  %v1431 = vld [vmem:[%s7 + $0x18] sm:$0xff]
  %v1432 = vld [vmem:[%s7 + $0x20] sm:$0xff]
  %v1433 = vld [vmem:[%s7 + $0x28] sm:$0xff]
  %v1434 = vld [vmem:[%s7 + $0x30] sm:$0xff]
  %v1435 = vld [vmem:[%s7 + $0x38] sm:$0xff]
  %v1436 = vld [vmem:[%s7 + $0x40] sm:$0xff]
  %v1437 = vld [vmem:[%s7 + $0x48] sm:$0xff]
  %v1438 = vld [vmem:[%s7 + $0x50] sm:$0xff]
  %v1439 = vld [vmem:[%s7 + $0x58] sm:$0xff]
  %v1440 = vld [vmem:[%s7 + $0x60] sm:$0xff]
  %v1441 = vld [vmem:[%s7 + $0x68] sm:$0xff]
  %v1442 = vld [vmem:[%s7 + $0x70] sm:$0xff]
  %v1443 = vld [vmem:[%s7 + $0x78] sm:$0xff]
  %v1444 = vld [vmem:[%s7 + $0x80] sm:$0xff]
  %v1445 = vld [vmem:[%s7 + $0x88] sm:$0xff]
  %v1446 = vld [vmem:[%s7 + $0x90] sm:$0xff]
  %v1447 = vld [vmem:[%s7 + $0x98] sm:$0xff]
  %1449 = vset.pattern.permute.xlu0 0
  %1450 = vperm.xlu0 %1449, %v1428
  %v1451 = vpop.permute.xlu0 %1450
  %1454 = vset.pattern.permute.xlu0 0
  %1455 = vperm.xlu0 %1454, %v1429
  %v1456 = vpop.permute.xlu0 %1455
  %1459 = vset.pattern.permute.xlu0 0
  %1460 = vperm.xlu0 %1459, %v1430
  %v1461 = vpop.permute.xlu0 %1460
  %1464 = vset.pattern.permute.xlu0 0
  %1465 = vperm.xlu0 %1464, %v1431
  %v1466 = vpop.permute.xlu0 %1465
  %1469 = vset.pattern.permute.xlu0 0
  %1470 = vperm.xlu0 %1469, %v1432
  %v1471 = vpop.permute.xlu0 %1470
  %1474 = vset.pattern.permute.xlu0 0
  %1475 = vperm.xlu0 %1474, %v1433
  %v1476 = vpop.permute.xlu0 %1475
  %1479 = vset.pattern.permute.xlu0 0
  %1480 = vperm.xlu0 %1479, %v1434
  %v1481 = vpop.permute.xlu0 %1480
  %1484 = vset.pattern.permute.xlu0 0
  %1485 = vperm.xlu0 %1484, %v1435
  %v1486 = vpop.permute.xlu0 %1485
  %1489 = vset.pattern.permute.xlu0 0
  %1490 = vperm.xlu0 %1489, %v1436
  %v1491 = vpop.permute.xlu0 %1490
  %1494 = vset.pattern.permute.xlu0 0
  %1495 = vperm.xlu0 %1494, %v1437
  %v1496 = vpop.permute.xlu0 %1495
  %1499 = vset.pattern.permute.xlu0 0
  %1500 = vperm.xlu0 %1499, %v1438
  %v1501 = vpop.permute.xlu0 %1500
  %1504 = vset.pattern.permute.xlu0 0
  %1505 = vperm.xlu0 %1504, %v1439
  %v1506 = vpop.permute.xlu0 %1505
  %1509 = vset.pattern.permute.xlu0 0
  %1510 = vperm.xlu0 %1509, %v1440
  %v1511 = vpop.permute.xlu0 %1510
  %1514 = vset.pattern.permute.xlu0 0
  %1515 = vperm.xlu0 %1514, %v1441
  %v1516 = vpop.permute.xlu0 %1515
  %1519 = vset.pattern.permute.xlu0 0
  %1520 = vperm.xlu0 %1519, %v1442
  %v1521 = vpop.permute.xlu0 %1520
  %1524 = vset.pattern.permute.xlu0 0
  %1525 = vperm.xlu0 %1524, %v1443
  %v1526 = vpop.permute.xlu0 %1525
  %1529 = vset.pattern.permute.xlu0 0
  %1530 = vperm.xlu0 %1529, %v1444
  %v1531 = vpop.permute.xlu0 %1530
  %1534 = vset.pattern.permute.xlu0 0
  %1535 = vperm.xlu0 %1534, %v1445
  %v1536 = vpop.permute.xlu0 %1535
  %1539 = vset.pattern.permute.xlu0 0
  %1540 = vperm.xlu0 %1539, %v1446
  %v1541 = vpop.permute.xlu0 %1540
  %1544 = vset.pattern.permute.xlu0 0
  %1545 = vperm.xlu0 %1544, %v1447
  %v1546 = vpop.permute.xlu0 %1545
  %v1568 = vunpack.c.l.b16 %v1398
  %v1569 = vunpack.c.h.b16 %v1398
  %v1570 = vunpack.c.l.b16 %v1399
  %v1571 = vunpack.c.h.b16 %v1399
  %v1572 = vunpack.c.l.b16 %v1400
  %v1573 = vunpack.c.h.b16 %v1400
  %v1574 = vunpack.c.l.b16 %v1401
  %v1575 = vunpack.c.h.b16 %v1401
  %v1576 = vunpack.c.l.b16 %v1402
  %v1577 = vunpack.c.h.b16 %v1402
  %v1578 = vunpack.c.l.b16 %v1403
  %v1579 = vunpack.c.h.b16 %v1403
  %v1580 = vunpack.c.l.b16 %v1404
  %v1581 = vunpack.c.h.b16 %v1404
  %v1582 = vunpack.c.l.b16 %v1405
  %v1583 = vunpack.c.h.b16 %v1405
  %v1584 = vunpack.c.l.b16 %v1406
  %v1585 = vunpack.c.h.b16 %v1406
  %v1586 = vunpack.c.l.b16 %v1407
  %v1587 = vunpack.c.h.b16 %v1407
  %v1588 = vunpack.c.l.b16 %v1408
  %v1589 = vunpack.c.h.b16 %v1408
  %v1590 = vunpack.c.l.b16 %v1409
  %v1591 = vunpack.c.h.b16 %v1409
  %v1592 = vunpack.c.l.b16 %v1410
  %v1593 = vunpack.c.h.b16 %v1410
  %v1594 = vunpack.c.l.b16 %v1411
  %v1595 = vunpack.c.h.b16 %v1411
  %v1596 = vunpack.c.l.b16 %v1412
  %v1597 = vunpack.c.h.b16 %v1412
  %v1598 = vunpack.c.l.b16 %v1413
  %v1599 = vunpack.c.h.b16 %v1413
  %v1600 = vunpack.c.l.b16 %v1414
  %v1601 = vunpack.c.h.b16 %v1414
  %v1602 = vunpack.c.l.b16 %v1415
  %v1603 = vunpack.c.h.b16 %v1415
  %v1604 = vunpack.c.l.b16 %v1416
  %v1605 = vunpack.c.h.b16 %v1416
  %v1606 = vunpack.c.l.b16 %v1417
  %v1607 = vunpack.c.h.b16 %v1417
  %v1608 = vpack.c.b16 %v1570, %v1568
  %v1609 = vpack.c.b16 %v1571, %v1569
  %v1610 = vpack.c.b16 %v1574, %v1572
  %v1611 = vpack.c.b16 %v1575, %v1573
  %v1612 = vpack.c.b16 %v1578, %v1576
  %v1613 = vpack.c.b16 %v1579, %v1577
  %v1614 = vpack.c.b16 %v1582, %v1580
  %v1615 = vpack.c.b16 %v1583, %v1581
  %v1616 = vpack.c.b16 %v1586, %v1584
  %v1617 = vpack.c.b16 %v1587, %v1585
  %v1618 = vpack.c.b16 %v1590, %v1588
  %v1619 = vpack.c.b16 %v1591, %v1589
  %v1620 = vpack.c.b16 %v1594, %v1592
  %v1621 = vpack.c.b16 %v1595, %v1593
  %v1622 = vpack.c.b16 %v1598, %v1596
  %v1623 = vpack.c.b16 %v1599, %v1597
  %v1624 = vpack.c.b16 %v1602, %v1600
  %v1625 = vpack.c.b16 %v1603, %v1601
  %v1626 = vpack.c.b16 %v1606, %v1604
  %v1627 = vpack.c.b16 %v1607, %v1605
  %v1639 = vsel %vm1194, %v1609, 0
  %v1642 = vsel %vm1194, %v1611, 0
  %v1645 = vsel %vm1194, %v1613, 0
  %v1648 = vsel %vm1194, %v1615, 0
  %v1651 = vsel %vm1194, %v1617, 0
  %v1654 = vsel %vm1194, %v1619, 0
  %v1657 = vsel %vm1194, %v1621, 0
  %v1660 = vsel %vm1194, %v1623, 0
  %v1663 = vsel %vm1194, %v1625, 0
  %v1666 = vsel %vm1194, %v1627, 0
  %1668 = vmatprep.subr.bf16.mxu0 0
  %1669 = vmatpush1.bf16.msra.mxu0 %v1418
  %1670 = vmatprep.subr.bf16.mxu0 0
  %1671 = vmatpush1.bf16.msra.mxu0 %v1419
  %1672 = vmatprep.subr.bf16.mxu0 0
  %1673 = vmatpush1.bf16.msra.mxu0 %v1420
  %1674 = vmatprep.subr.bf16.mxu0 0
  %1675 = vmatpush1.bf16.msra.mxu0 %v1421
  %1676 = vmatprep.subr.bf16.mxu0 0
  %1677 = vmatpush1.bf16.msra.mxu0 %v1422
  %1678 = vmatprep.subr.bf16.mxu0 0
  %1679 = vmatpush1.bf16.msra.mxu0 %v1423
  %1680 = vmatprep.subr.bf16.mxu0 0
  %1681 = vmatpush1.bf16.msra.mxu0 %v1424
  %1682 = vmatprep.subr.bf16.mxu0 0
  %1683 = vmatpush1.bf16.msra.mxu0 %v1425
  %1684 = vmatprep.subr.bf16.mxu0 0
  %1685 = vmatpush1.bf16.msra.mxu0 %v1426
  %1686 = vmatprep.subr.bf16.mxu0 0
  %1687 = vmatpush1.bf16.msra.mxu0 %v1427
  %1688 = vmatprep.subr.bf16.mxu0 0
  %1689 = vmatpush1.bf16.msra.mxu0 0
  %1690 = vmatprep.subr.bf16.mxu0 0
  %1691 = vmatpush1.bf16.msra.mxu0 0
  %1692 = vmatprep.subr.bf16.mxu0 0
  %1693 = vmatpush1.bf16.msra.mxu0 0
  %1694 = vmatprep.subr.bf16.mxu0 0
  %1695 = vmatpush1.bf16.msra.mxu0 0
  %1696 = vmatprep.subr.bf16.mxu0 0
  %1697 = vmatpush1.bf16.msra.mxu0 0
  %1698 = vmatprep.subr.bf16.mxu0 0
  %1699 = vmatpush1.bf16.msra.mxu0 0
  %1700 = vmatprep.mubr.bf16.mxu0 %v1639
  %1701 = vmatmul.mubr.bf16.gmra.mrb[0].mxu0 %v1608
  %v1702 = vpop.f32.mrb[0].mxu0
  %v1703 = vadd.f32 %v1451, %v1702
  %v1704 = vpop.f32.mrb[0].mxu0
  %v1705 = vpop.f32.mrb[0].mxu0
  %v1706 = vadd.f32 %v1456, %v1705
  %v1707 = vpop.f32.mrb[0].mxu0
  %1708 = vmatprep.mubr.bf16.mxu0 %v1642
  %1709 = vmatmul.mubr.bf16.gmra.mrb[0].mxu0 %v1610
  %v1710 = vpop.f32.mrb[0].mxu0
  %v1711 = vadd.f32 %v1461, %v1710
  %v1712 = vpop.f32.mrb[0].mxu0
  %v1713 = vpop.f32.mrb[0].mxu0
  %v1714 = vadd.f32 %v1466, %v1713
  %v1715 = vpop.f32.mrb[0].mxu0
  %1716 = vmatprep.mubr.bf16.mxu0 %v1645
  %1717 = vmatmul.mubr.bf16.gmra.mrb[0].mxu0 %v1612
  %v1718 = vpop.f32.mrb[0].mxu0
  %v1719 = vadd.f32 %v1471, %v1718
  %v1720 = vpop.f32.mrb[0].mxu0
  %v1721 = vpop.f32.mrb[0].mxu0
  %v1722 = vadd.f32 %v1476, %v1721
  %v1723 = vpop.f32.mrb[0].mxu0
  %1724 = vmatprep.mubr.bf16.mxu0 %v1648
  %1725 = vmatmul.mubr.bf16.gmra.mrb[0].mxu0 %v1614
  %v1726 = vpop.f32.mrb[0].mxu0
  %v1727 = vadd.f32 %v1481, %v1726
  %v1728 = vpop.f32.mrb[0].mxu0
  %v1729 = vpop.f32.mrb[0].mxu0
  %v1730 = vadd.f32 %v1486, %v1729
  %v1731 = vpop.f32.mrb[0].mxu0
  %1732 = vmatprep.mubr.bf16.mxu0 %v1651
  %1733 = vmatmul.mubr.bf16.gmra.mrb[0].mxu0 %v1616
  %v1734 = vpop.f32.mrb[0].mxu0
  %v1735 = vadd.f32 %v1491, %v1734
  %v1736 = vpop.f32.mrb[0].mxu0
  %v1737 = vpop.f32.mrb[0].mxu0
  %v1738 = vadd.f32 %v1496, %v1737
  %v1739 = vpop.f32.mrb[0].mxu0
  %1740 = vmatprep.mubr.bf16.mxu0 %v1654
  %1741 = vmatmul.mubr.bf16.gmra.mrb[0].mxu0 %v1618
  %v1742 = vpop.f32.mrb[0].mxu0
  %v1743 = vadd.f32 %v1501, %v1742
  %v1744 = vpop.f32.mrb[0].mxu0
  %v1745 = vpop.f32.mrb[0].mxu0
  %v1746 = vadd.f32 %v1506, %v1745
  %v1747 = vpop.f32.mrb[0].mxu0
  %1748 = vmatprep.mubr.bf16.mxu0 %v1657
  %1749 = vmatmul.mubr.bf16.gmra.mrb[0].mxu0 %v1620
  %v1750 = vpop.f32.mrb[0].mxu0
  %v1751 = vadd.f32 %v1511, %v1750
  %v1752 = vpop.f32.mrb[0].mxu0
  %v1753 = vpop.f32.mrb[0].mxu0
  %v1754 = vadd.f32 %v1516, %v1753
  %v1755 = vpop.f32.mrb[0].mxu0
  %1756 = vmatprep.mubr.bf16.mxu0 %v1660
  %1757 = vmatmul.mubr.bf16.gmra.mrb[0].mxu0 %v1622
  %v1758 = vpop.f32.mrb[0].mxu0
  %v1759 = vadd.f32 %v1521, %v1758
  %v1760 = vpop.f32.mrb[0].mxu0
  %v1761 = vpop.f32.mrb[0].mxu0
  %v1762 = vadd.f32 %v1526, %v1761
  %v1763 = vpop.f32.mrb[0].mxu0
  %1764 = vmatprep.mubr.bf16.mxu0 %v1663
  %1765 = vmatmul.mubr.bf16.gmra.mrb[0].mxu0 %v1624
  %v1766 = vpop.f32.mrb[0].mxu0
  %v1767 = vadd.f32 %v1531, %v1766
  %v1768 = vpop.f32.mrb[0].mxu0
  %v1769 = vpop.f32.mrb[0].mxu0
  %v1770 = vadd.f32 %v1536, %v1769
  %v1771 = vpop.f32.mrb[0].mxu0
  %1772 = vmatprep.mubr.bf16.mxu0 %v1666
  %1773 = vmatmul.mubr.bf16.gmra.mrb[0].mxu0 %v1626
  %v1774 = vpop.f32.mrb[0].mxu0
  %v1775 = vadd.f32 %v1541, %v1774
  %v1776 = vpop.f32.mrb[0].mxu0
  %v1777 = vpop.f32.mrb[0].mxu0
  %v1778 = vadd.f32 %v1546, %v1777
  %v1779 = vpop.f32.mrb[0].mxu0
  %1780 = vdwg.mxu0
  %v1781 = vadd.f32 %v1703, %v934
  %v1782 = vadd.f32 %v1706, %v935
  %v1783 = vadd.f32 %v1711, %v936
  %v1784 = vadd.f32 %v1714, %v937
  %v1785 = vadd.f32 %v1719, %v938
  %v1786 = vadd.f32 %v1722, %v939
  %v1787 = vadd.f32 %v1727, %v940
  %v1788 = vadd.f32 %v1730, %v941
  %v1789 = vadd.f32 %v1735, %v942
  %v1790 = vadd.f32 %v1738, %v943
  %v1791 = vadd.f32 %v1743, %v944
  %v1792 = vadd.f32 %v1746, %v945
  %v1793 = vadd.f32 %v1751, %v946
  %v1794 = vadd.f32 %v1754, %v947
  %v1795 = vadd.f32 %v1759, %v948
  %v1796 = vadd.f32 %v1762, %v949
  %v1797 = vadd.f32 %v1767, %v950
  %v1798 = vadd.f32 %v1770, %v951
  %v1799 = vadd.f32 %v1775, %v952
  %v1800 = vadd.f32 %v1778, %v953
  %vm1801 = vcmp.ge.f32.partialorder %v1781, 0.0
  %vm1802 = vcmp.ge.f32.partialorder %v1782, 0.0
  %vm1803 = vcmp.ge.f32.partialorder %v1783, 0.0
  %vm1804 = vcmp.ge.f32.partialorder %v1784, 0.0
  %vm1805 = vcmp.ge.f32.partialorder %v1785, 0.0
  %vm1806 = vcmp.ge.f32.partialorder %v1786, 0.0
  %vm1807 = vcmp.ge.f32.partialorder %v1787, 0.0
  %vm1808 = vcmp.ge.f32.partialorder %v1788, 0.0
  %vm1809 = vcmp.ge.f32.partialorder %v1789, 0.0
  %vm1810 = vcmp.ge.f32.partialorder %v1790, 0.0
  %vm1811 = vcmp.ge.f32.partialorder %v1791, 0.0
  %vm1812 = vcmp.ge.f32.partialorder %v1792, 0.0
  %vm1813 = vcmp.ge.f32.partialorder %v1793, 0.0
  %vm1814 = vcmp.ge.f32.partialorder %v1794, 0.0
  %vm1815 = vcmp.ge.f32.partialorder %v1795, 0.0
  %vm1816 = vcmp.ge.f32.partialorder %v1796, 0.0
  %vm1817 = vcmp.ge.f32.partialorder %v1797, 0.0
  %vm1818 = vcmp.ge.f32.partialorder %v1798, 0.0
  %vm1819 = vcmp.ge.f32.partialorder %v1799, 0.0
  %vm1820 = vcmp.ge.f32.partialorder %v1800, 0.0
  %v1821 = vmul.f32 %v1781, 0.01
  %v1822 = vmul.f32 %v1782, 0.01
  %v1823 = vmul.f32 %v1783, 0.01
  %v1824 = vmul.f32 %v1784, 0.01
  %v1825 = vmul.f32 %v1785, 0.01
  %v1826 = vmul.f32 %v1786, 0.01
  %v1827 = vmul.f32 %v1787, 0.01
  %v1828 = vmul.f32 %v1788, 0.01
  %v1829 = vmul.f32 %v1789, 0.01
  %v1830 = vmul.f32 %v1790, 0.01
  %v1831 = vmul.f32 %v1791, 0.01
  %v1832 = vmul.f32 %v1792, 0.01
  %v1833 = vmul.f32 %v1793, 0.01
  %v1834 = vmul.f32 %v1794, 0.01
  %v1835 = vmul.f32 %v1795, 0.01
  %v1836 = vmul.f32 %v1796, 0.01
  %v1837 = vmul.f32 %v1797, 0.01
  %v1838 = vmul.f32 %v1798, 0.01
  %v1839 = vmul.f32 %v1799, 0.01
  %v1840 = vmul.f32 %v1800, 0.01
  %v1841 = vsel %vm1801, %v1781, %v1821
  %v1842 = vsel %vm1802, %v1782, %v1822
  %v1843 = vsel %vm1803, %v1783, %v1823
  %v1844 = vsel %vm1804, %v1784, %v1824
  %v1845 = vsel %vm1805, %v1785, %v1825
  %v1846 = vsel %vm1806, %v1786, %v1826
  %v1847 = vsel %vm1807, %v1787, %v1827
  %v1848 = vsel %vm1808, %v1788, %v1828
  %v1849 = vsel %vm1809, %v1789, %v1829
  %v1850 = vsel %vm1810, %v1790, %v1830
  %v1851 = vsel %vm1811, %v1791, %v1831
  %v1852 = vsel %vm1812, %v1792, %v1832
  %v1853 = vsel %vm1813, %v1793, %v1833
  %v1854 = vsel %vm1814, %v1794, %v1834
  %v1855 = vsel %vm1815, %v1795, %v1835
  %v1856 = vsel %vm1816, %v1796, %v1836
  %v1857 = vsel %vm1817, %v1797, %v1837
  %v1858 = vsel %vm1818, %v1798, %v1838
  %v1859 = vsel %vm1819, %v1799, %v1839
  %v1860 = vsel %vm1820, %v1800, %v1840
  %v1861 = vld [vmem:[%s8] sm:$0xff]
  %v1862 = vld [vmem:[%s8 + $0x8] sm:$0xff]
  %v1863 = vld [vmem:[%s8 + $0x10] sm:$0xff]
  %v1864 = vld [vmem:[%s8 + $0x18] sm:$0xff]
  %v1865 = vld [vmem:[%s8 + $0x20] sm:$0xff]
  %v1866 = vld [vmem:[%s8 + $0x28] sm:$0xff]
  %v1867 = vld [vmem:[%s8 + $0x30] sm:$0xff]
  %v1868 = vld [vmem:[%s8 + $0x38] sm:$0xff]
  %v1869 = vld [vmem:[%s8 + $0x40] sm:$0xff]
  %v1870 = vld [vmem:[%s8 + $0x48] sm:$0xff]
  %v1871 = vld [vmem:[%s8 + $0x50] sm:$0xff]
  %v1872 = vld [vmem:[%s8 + $0x58] sm:$0xff]
  %v1873 = vld [vmem:[%s8 + $0x60] sm:$0xff]
  %v1874 = vld [vmem:[%s8 + $0x68] sm:$0xff]
  %v1875 = vld [vmem:[%s8 + $0x70] sm:$0xff]
  %v1876 = vld [vmem:[%s8 + $0x78] sm:$0xff]
  %v1877 = vld [vmem:[%s8 + $0x80] sm:$0xff]
  %v1878 = vld [vmem:[%s8 + $0x88] sm:$0xff]
  %v1879 = vld [vmem:[%s8 + $0x90] sm:$0xff]
  %v1880 = vld [vmem:[%s8 + $0x98] sm:$0xff]
  %v1881 = vpack.c.bf16 %v1842, %v1841
  %v1882 = vpack.c.bf16 %v1844, %v1843
  %v1883 = vpack.c.bf16 %v1846, %v1845
  %v1884 = vpack.c.bf16 %v1848, %v1847
  %v1885 = vpack.c.bf16 %v1850, %v1849
  %v1886 = vpack.c.bf16 %v1852, %v1851
  %v1887 = vpack.c.bf16 %v1854, %v1853
  %v1888 = vpack.c.bf16 %v1856, %v1855
  %v1889 = vpack.c.bf16 %v1858, %v1857
  %v1890 = vpack.c.bf16 %v1860, %v1859
  %v1891 = vld [vmem:[%s9] sm:$0xff]
  %v1892 = vld [vmem:[%s9 + $0x8] sm:$0xff]
  %v1893 = vld [vmem:[%s9 + $0x10] sm:$0xff]
  %v1894 = vld [vmem:[%s9 + $0x18] sm:$0xff]
  %v1895 = vld [vmem:[%s9 + $0x20] sm:$0xff]
  %v1896 = vld [vmem:[%s9 + $0x28] sm:$0xff]
  %v1897 = vld [vmem:[%s9 + $0x30] sm:$0xff]
  %v1898 = vld [vmem:[%s9 + $0x38] sm:$0xff]
  %v1899 = vld [vmem:[%s9 + $0x40] sm:$0xff]
  %v1900 = vld [vmem:[%s9 + $0x48] sm:$0xff]
  %v1901 = vld [vmem:[%s9 + $0x50] sm:$0xff]
  %v1902 = vld [vmem:[%s9 + $0x58] sm:$0xff]
  %v1903 = vld [vmem:[%s9 + $0x60] sm:$0xff]
  %v1904 = vld [vmem:[%s9 + $0x68] sm:$0xff]
  %v1905 = vld [vmem:[%s9 + $0x70] sm:$0xff]
  %v1906 = vld [vmem:[%s9 + $0x78] sm:$0xff]
  %v1907 = vld [vmem:[%s9 + $0x80] sm:$0xff]
  %v1908 = vld [vmem:[%s9 + $0x88] sm:$0xff]
  %v1909 = vld [vmem:[%s9 + $0x90] sm:$0xff]
  %v1910 = vld [vmem:[%s9 + $0x98] sm:$0xff]
  %1912 = vset.pattern.permute.xlu0 0
  %1913 = vperm.xlu0 %1912, %v1891
  %v1914 = vpop.permute.xlu0 %1913
  %1917 = vset.pattern.permute.xlu0 0
  %1918 = vperm.xlu0 %1917, %v1892
  %v1919 = vpop.permute.xlu0 %1918
  %1922 = vset.pattern.permute.xlu0 0
  %1923 = vperm.xlu0 %1922, %v1893
  %v1924 = vpop.permute.xlu0 %1923
  %1927 = vset.pattern.permute.xlu0 0
  %1928 = vperm.xlu0 %1927, %v1894
  %v1929 = vpop.permute.xlu0 %1928
  %1932 = vset.pattern.permute.xlu0 0
  %1933 = vperm.xlu0 %1932, %v1895
  %v1934 = vpop.permute.xlu0 %1933
  %1937 = vset.pattern.permute.xlu0 0
  %1938 = vperm.xlu0 %1937, %v1896
  %v1939 = vpop.permute.xlu0 %1938
  %1942 = vset.pattern.permute.xlu0 0
  %1943 = vperm.xlu0 %1942, %v1897
  %v1944 = vpop.permute.xlu0 %1943
  %1947 = vset.pattern.permute.xlu0 0
  %1948 = vperm.xlu0 %1947, %v1898
  %v1949 = vpop.permute.xlu0 %1948
  %1952 = vset.pattern.permute.xlu0 0
  %1953 = vperm.xlu0 %1952, %v1899
  %v1954 = vpop.permute.xlu0 %1953
  %1957 = vset.pattern.permute.xlu0 0
  %1958 = vperm.xlu0 %1957, %v1900
  %v1959 = vpop.permute.xlu0 %1958
  %1962 = vset.pattern.permute.xlu0 0
  %1963 = vperm.xlu0 %1962, %v1901
  %v1964 = vpop.permute.xlu0 %1963
  %1967 = vset.pattern.permute.xlu0 0
  %1968 = vperm.xlu0 %1967, %v1902
  %v1969 = vpop.permute.xlu0 %1968
  %1972 = vset.pattern.permute.xlu0 0
  %1973 = vperm.xlu0 %1972, %v1903
  %v1974 = vpop.permute.xlu0 %1973
  %1977 = vset.pattern.permute.xlu0 0
  %1978 = vperm.xlu0 %1977, %v1904
  %v1979 = vpop.permute.xlu0 %1978
  %1982 = vset.pattern.permute.xlu0 0
  %1983 = vperm.xlu0 %1982, %v1905
  %v1984 = vpop.permute.xlu0 %1983
  %1987 = vset.pattern.permute.xlu0 0
  %1988 = vperm.xlu0 %1987, %v1906
  %v1989 = vpop.permute.xlu0 %1988
  %1992 = vset.pattern.permute.xlu0 0
  %1993 = vperm.xlu0 %1992, %v1907
  %v1994 = vpop.permute.xlu0 %1993
  %1997 = vset.pattern.permute.xlu0 0
  %1998 = vperm.xlu0 %1997, %v1908
  %v1999 = vpop.permute.xlu0 %1998
  %2002 = vset.pattern.permute.xlu0 0
  %2003 = vperm.xlu0 %2002, %v1909
  %v2004 = vpop.permute.xlu0 %2003
  %2007 = vset.pattern.permute.xlu0 0
  %2008 = vperm.xlu0 %2007, %v1910
  %v2009 = vpop.permute.xlu0 %2008
  %v2031 = vunpack.c.l.b16 %v1861
  %v2032 = vunpack.c.h.b16 %v1861
  %v2033 = vunpack.c.l.b16 %v1862
  %v2034 = vunpack.c.h.b16 %v1862
  %v2035 = vunpack.c.l.b16 %v1863
  %v2036 = vunpack.c.h.b16 %v1863
  %v2037 = vunpack.c.l.b16 %v1864
  %v2038 = vunpack.c.h.b16 %v1864
  %v2039 = vunpack.c.l.b16 %v1865
  %v2040 = vunpack.c.h.b16 %v1865
  %v2041 = vunpack.c.l.b16 %v1866
  %v2042 = vunpack.c.h.b16 %v1866
  %v2043 = vunpack.c.l.b16 %v1867
  %v2044 = vunpack.c.h.b16 %v1867
  %v2045 = vunpack.c.l.b16 %v1868
  %v2046 = vunpack.c.h.b16 %v1868
  %v2047 = vunpack.c.l.b16 %v1869
  %v2048 = vunpack.c.h.b16 %v1869
  %v2049 = vunpack.c.l.b16 %v1870
  %v2050 = vunpack.c.h.b16 %v1870
  %v2051 = vunpack.c.l.b16 %v1871
  %v2052 = vunpack.c.h.b16 %v1871
  %v2053 = vunpack.c.l.b16 %v1872
  %v2054 = vunpack.c.h.b16 %v1872
  %v2055 = vunpack.c.l.b16 %v1873
  %v2056 = vunpack.c.h.b16 %v1873
  %v2057 = vunpack.c.l.b16 %v1874
  %v2058 = vunpack.c.h.b16 %v1874
  %v2059 = vunpack.c.l.b16 %v1875
  %v2060 = vunpack.c.h.b16 %v1875
  %v2061 = vunpack.c.l.b16 %v1876
  %v2062 = vunpack.c.h.b16 %v1876
  %v2063 = vunpack.c.l.b16 %v1877
  %v2064 = vunpack.c.h.b16 %v1877
  %v2065 = vunpack.c.l.b16 %v1878
  %v2066 = vunpack.c.h.b16 %v1878
  %v2067 = vunpack.c.l.b16 %v1879
  %v2068 = vunpack.c.h.b16 %v1879
  %v2069 = vunpack.c.l.b16 %v1880
  %v2070 = vunpack.c.h.b16 %v1880
  %v2071 = vpack.c.b16 %v2033, %v2031
  %v2072 = vpack.c.b16 %v2034, %v2032
  %v2073 = vpack.c.b16 %v2037, %v2035
  %v2074 = vpack.c.b16 %v2038, %v2036
  %v2075 = vpack.c.b16 %v2041, %v2039
  %v2076 = vpack.c.b16 %v2042, %v2040
  %v2077 = vpack.c.b16 %v2045, %v2043
  %v2078 = vpack.c.b16 %v2046, %v2044
  %v2079 = vpack.c.b16 %v2049, %v2047
  %v2080 = vpack.c.b16 %v2050, %v2048
  %v2081 = vpack.c.b16 %v2053, %v2051
  %v2082 = vpack.c.b16 %v2054, %v2052
  %v2083 = vpack.c.b16 %v2057, %v2055
  %v2084 = vpack.c.b16 %v2058, %v2056
  %v2085 = vpack.c.b16 %v2061, %v2059
  %v2086 = vpack.c.b16 %v2062, %v2060
  %v2087 = vpack.c.b16 %v2065, %v2063
  %v2088 = vpack.c.b16 %v2066, %v2064
  %v2089 = vpack.c.b16 %v2069, %v2067
  %v2090 = vpack.c.b16 %v2070, %v2068
  %v2102 = vsel %vm1194, %v2072, 0
  %v2105 = vsel %vm1194, %v2074, 0
  %v2108 = vsel %vm1194, %v2076, 0
  %v2111 = vsel %vm1194, %v2078, 0
  %v2114 = vsel %vm1194, %v2080, 0
  %v2117 = vsel %vm1194, %v2082, 0
  %v2120 = vsel %vm1194, %v2084, 0
  %v2123 = vsel %vm1194, %v2086, 0
  %v2126 = vsel %vm1194, %v2088, 0
  %v2129 = vsel %vm1194, %v2090, 0
  %2131 = vmatprep.subr.bf16.mxu0 0
  %2132 = vmatpush1.bf16.msra.mxu0 %v1881
  %2133 = vmatprep.subr.bf16.mxu0 0
  %2134 = vmatpush1.bf16.msra.mxu0 %v1882
  %2135 = vmatprep.subr.bf16.mxu0 0
  %2136 = vmatpush1.bf16.msra.mxu0 %v1883
  %2137 = vmatprep.subr.bf16.mxu0 0
  %2138 = vmatpush1.bf16.msra.mxu0 %v1884
  %2139 = vmatprep.subr.bf16.mxu0 0
  %2140 = vmatpush1.bf16.msra.mxu0 %v1885
  %2141 = vmatprep.subr.bf16.mxu0 0
  %2142 = vmatpush1.bf16.msra.mxu0 %v1886
  %2143 = vmatprep.subr.bf16.mxu0 0
  %2144 = vmatpush1.bf16.msra.mxu0 %v1887
  %2145 = vmatprep.subr.bf16.mxu0 0
  %2146 = vmatpush1.bf16.msra.mxu0 %v1888
  %2147 = vmatprep.subr.bf16.mxu0 0
  %2148 = vmatpush1.bf16.msra.mxu0 %v1889
  %2149 = vmatprep.subr.bf16.mxu0 0
  %2150 = vmatpush1.bf16.msra.mxu0 %v1890
  %2151 = vmatprep.subr.bf16.mxu0 0
  %2152 = vmatpush1.bf16.msra.mxu0 0
  %2153 = vmatprep.subr.bf16.mxu0 0
  %2154 = vmatpush1.bf16.msra.mxu0 0
  %2155 = vmatprep.subr.bf16.mxu0 0
  %2156 = vmatpush1.bf16.msra.mxu0 0
  %2157 = vmatprep.subr.bf16.mxu0 0
  %2158 = vmatpush1.bf16.msra.mxu0 0
  %2159 = vmatprep.subr.bf16.mxu0 0
  %2160 = vmatpush1.bf16.msra.mxu0 0
  %2161 = vmatprep.subr.bf16.mxu0 0
  %2162 = vmatpush1.bf16.msra.mxu0 0
  %2163 = vmatprep.mubr.bf16.mxu0 %v2102
  %2164 = vmatmul.mubr.bf16.gmra.mrb[0].mxu0 %v2071
  %v2165 = vpop.f32.mrb[0].mxu0
  %v2166 = vadd.f32 %v1914, %v2165
  %v2167 = vpop.f32.mrb[0].mxu0
  %v2168 = vpop.f32.mrb[0].mxu0
  %v2169 = vadd.f32 %v1919, %v2168
  %v2170 = vpop.f32.mrb[0].mxu0
  %2171 = vmatprep.mubr.bf16.mxu0 %v2105
  %2172 = vmatmul.mubr.bf16.gmra.mrb[0].mxu0 %v2073
  %v2173 = vpop.f32.mrb[0].mxu0
  %v2174 = vadd.f32 %v1924, %v2173
  %v2175 = vpop.f32.mrb[0].mxu0
  %v2176 = vpop.f32.mrb[0].mxu0
  %v2177 = vadd.f32 %v1929, %v2176
  %v2178 = vpop.f32.mrb[0].mxu0
  %2179 = vmatprep.mubr.bf16.mxu0 %v2108
  %2180 = vmatmul.mubr.bf16.gmra.mrb[0].mxu0 %v2075
  %v2181 = vpop.f32.mrb[0].mxu0
  %v2182 = vadd.f32 %v1934, %v2181
  %v2183 = vpop.f32.mrb[0].mxu0
  %v2184 = vpop.f32.mrb[0].mxu0
  %v2185 = vadd.f32 %v1939, %v2184
  %v2186 = vpop.f32.mrb[0].mxu0
  %2187 = vmatprep.mubr.bf16.mxu0 %v2111
  %2188 = vmatmul.mubr.bf16.gmra.mrb[0].mxu0 %v2077
  %v2189 = vpop.f32.mrb[0].mxu0
  %v2190 = vadd.f32 %v1944, %v2189
  %v2191 = vpop.f32.mrb[0].mxu0
  %v2192 = vpop.f32.mrb[0].mxu0
  %v2193 = vadd.f32 %v1949, %v2192
  %v2194 = vpop.f32.mrb[0].mxu0
  %2195 = vmatprep.mubr.bf16.mxu0 %v2114
  %2196 = vmatmul.mubr.bf16.gmra.mrb[0].mxu0 %v2079
  %v2197 = vpop.f32.mrb[0].mxu0
  %v2198 = vadd.f32 %v1954, %v2197
  %v2199 = vpop.f32.mrb[0].mxu0
  %v2200 = vpop.f32.mrb[0].mxu0
  %v2201 = vadd.f32 %v1959, %v2200
  %v2202 = vpop.f32.mrb[0].mxu0
  %2203 = vmatprep.mubr.bf16.mxu0 %v2117
  %2204 = vmatmul.mubr.bf16.gmra.mrb[0].mxu0 %v2081
  %v2205 = vpop.f32.mrb[0].mxu0
  %v2206 = vadd.f32 %v1964, %v2205
  %v2207 = vpop.f32.mrb[0].mxu0
  %v2208 = vpop.f32.mrb[0].mxu0
  %v2209 = vadd.f32 %v1969, %v2208
  %v2210 = vpop.f32.mrb[0].mxu0
  %2211 = vmatprep.mubr.bf16.mxu0 %v2120
  %2212 = vmatmul.mubr.bf16.gmra.mrb[0].mxu0 %v2083
  %v2213 = vpop.f32.mrb[0].mxu0
  %v2214 = vadd.f32 %v1974, %v2213
  %v2215 = vpop.f32.mrb[0].mxu0
  %v2216 = vpop.f32.mrb[0].mxu0
  %v2217 = vadd.f32 %v1979, %v2216
  %v2218 = vpop.f32.mrb[0].mxu0
  %2219 = vmatprep.mubr.bf16.mxu0 %v2123
  %2220 = vmatmul.mubr.bf16.gmra.mrb[0].mxu0 %v2085
  %v2221 = vpop.f32.mrb[0].mxu0
  %v2222 = vadd.f32 %v1984, %v2221
  %v2223 = vpop.f32.mrb[0].mxu0
  %v2224 = vpop.f32.mrb[0].mxu0
  %v2225 = vadd.f32 %v1989, %v2224
  %v2226 = vpop.f32.mrb[0].mxu0
  %2227 = vmatprep.mubr.bf16.mxu0 %v2126
  %2228 = vmatmul.mubr.bf16.gmra.mrb[0].mxu0 %v2087
  %v2229 = vpop.f32.mrb[0].mxu0
  %v2230 = vadd.f32 %v1994, %v2229
  %v2231 = vpop.f32.mrb[0].mxu0
  %v2232 = vpop.f32.mrb[0].mxu0
  %v2233 = vadd.f32 %v1999, %v2232
  %v2234 = vpop.f32.mrb[0].mxu0
  %2235 = vmatprep.mubr.bf16.mxu0 %v2129
  %2236 = vmatmul.mubr.bf16.gmra.mrb[0].mxu0 %v2089
  %v2237 = vpop.f32.mrb[0].mxu0
  %v2238 = vadd.f32 %v2004, %v2237
  %v2239 = vpop.f32.mrb[0].mxu0
  %v2240 = vpop.f32.mrb[0].mxu0
  %v2241 = vadd.f32 %v2009, %v2240
  %v2242 = vpop.f32.mrb[0].mxu0
  %2243 = vdwg.mxu0
  %vm2244 = vcmp.ge.f32.partialorder %v2166, 0.0
  %vm2245 = vcmp.ge.f32.partialorder %v2169, 0.0
  %vm2246 = vcmp.ge.f32.partialorder %v2174, 0.0
  %vm2247 = vcmp.ge.f32.partialorder %v2177, 0.0
  %vm2248 = vcmp.ge.f32.partialorder %v2182, 0.0
  %vm2249 = vcmp.ge.f32.partialorder %v2185, 0.0
  %vm2250 = vcmp.ge.f32.partialorder %v2190, 0.0
  %vm2251 = vcmp.ge.f32.partialorder %v2193, 0.0
  %vm2252 = vcmp.ge.f32.partialorder %v2198, 0.0
  %vm2253 = vcmp.ge.f32.partialorder %v2201, 0.0
  %vm2254 = vcmp.ge.f32.partialorder %v2206, 0.0
  %vm2255 = vcmp.ge.f32.partialorder %v2209, 0.0
  %vm2256 = vcmp.ge.f32.partialorder %v2214, 0.0
  %vm2257 = vcmp.ge.f32.partialorder %v2217, 0.0
  %vm2258 = vcmp.ge.f32.partialorder %v2222, 0.0
  %vm2259 = vcmp.ge.f32.partialorder %v2225, 0.0
  %vm2260 = vcmp.ge.f32.partialorder %v2230, 0.0
  %vm2261 = vcmp.ge.f32.partialorder %v2233, 0.0
  %vm2262 = vcmp.ge.f32.partialorder %v2238, 0.0
  %vm2263 = vcmp.ge.f32.partialorder %v2241, 0.0
  %v2264 = vmul.f32 %v2166, 0.01
  %v2265 = vmul.f32 %v2169, 0.01
  %v2266 = vmul.f32 %v2174, 0.01
  %v2267 = vmul.f32 %v2177, 0.01
  %v2268 = vmul.f32 %v2182, 0.01
  %v2269 = vmul.f32 %v2185, 0.01
  %v2270 = vmul.f32 %v2190, 0.01
  %v2271 = vmul.f32 %v2193, 0.01
  %v2272 = vmul.f32 %v2198, 0.01
  %v2273 = vmul.f32 %v2201, 0.01
  %v2274 = vmul.f32 %v2206, 0.01
  %v2275 = vmul.f32 %v2209, 0.01
  %v2276 = vmul.f32 %v2214, 0.01
  %v2277 = vmul.f32 %v2217, 0.01
  %v2278 = vmul.f32 %v2222, 0.01
  %v2279 = vmul.f32 %v2225, 0.01
  %v2280 = vmul.f32 %v2230, 0.01
  %v2281 = vmul.f32 %v2233, 0.01
  %v2282 = vmul.f32 %v2238, 0.01
  %v2283 = vmul.f32 %v2241, 0.01
  %v2284 = vsel %vm2244, %v2166, %v2264
  %v2285 = vsel %vm2245, %v2169, %v2265
  %v2286 = vsel %vm2246, %v2174, %v2266
  %v2287 = vsel %vm2247, %v2177, %v2267
  %v2288 = vsel %vm2248, %v2182, %v2268
  %v2289 = vsel %vm2249, %v2185, %v2269
  %v2290 = vsel %vm2250, %v2190, %v2270
  %v2291 = vsel %vm2251, %v2193, %v2271
  %v2292 = vsel %vm2252, %v2198, %v2272
  %v2293 = vsel %vm2253, %v2201, %v2273
  %v2294 = vsel %vm2254, %v2206, %v2274
  %v2295 = vsel %vm2255, %v2209, %v2275
  %v2296 = vsel %vm2256, %v2214, %v2276
  %v2297 = vsel %vm2257, %v2217, %v2277
  %v2298 = vsel %vm2258, %v2222, %v2278
  %v2299 = vsel %vm2259, %v2225, %v2279
  %v2300 = vsel %vm2260, %v2230, %v2280
  %v2301 = vsel %vm2261, %v2233, %v2281
  %v2302 = vsel %vm2262, %v2238, %v2282
  %v2303 = vsel %vm2263, %v2241, %v2283
  %v2304 = vld [vmem:[%s10] sm:$0xff]
  %v2305 = vpack.c.bf16 %v2285, %v2284
  %v2306 = vpack.c.bf16 %v2287, %v2286
  %v2307 = vpack.c.bf16 %v2289, %v2288
  %v2308 = vpack.c.bf16 %v2291, %v2290
  %v2309 = vpack.c.bf16 %v2293, %v2292
  %v2310 = vpack.c.bf16 %v2295, %v2294
  %v2311 = vpack.c.bf16 %v2297, %v2296
  %v2312 = vpack.c.bf16 %v2299, %v2298
  %v2313 = vpack.c.bf16 %v2301, %v2300
  %v2314 = vpack.c.bf16 %v2303, %v2302
  %v2316 = vunpack.c.l.b16 %v2304
  %v2317 = vunpack.c.h.b16 %v2304
  %v2318 = vpack.c.b16 %v2316, %v2316
  %v2319 = vpack.c.b16 %v2317, %v2317
  %v2322 = vsel %vm1194, %v2319, 0
  %2324 = vmatprep.subr.bf16.mxu0 0
  %2325 = vmatpush1.bf16.msra.mxu0 %v2305
  %2326 = vmatprep.subr.bf16.mxu0 0
  %2327 = vmatpush1.bf16.msra.mxu0 %v2306
  %2328 = vmatprep.subr.bf16.mxu0 0
  %2329 = vmatpush1.bf16.msra.mxu0 %v2307
  %2330 = vmatprep.subr.bf16.mxu0 0
  %2331 = vmatpush1.bf16.msra.mxu0 %v2308
  %2332 = vmatprep.subr.bf16.mxu0 0
  %2333 = vmatpush1.bf16.msra.mxu0 %v2309
  %2334 = vmatprep.subr.bf16.mxu0 0
  %2335 = vmatpush1.bf16.msra.mxu0 %v2310
  %2336 = vmatprep.subr.bf16.mxu0 0
  %2337 = vmatpush1.bf16.msra.mxu0 %v2311
  %2338 = vmatprep.subr.bf16.mxu0 0
  %2339 = vmatpush1.bf16.msra.mxu0 %v2312
  %2340 = vmatprep.subr.bf16.mxu0 0
  %2341 = vmatpush1.bf16.msra.mxu0 %v2313
  %2342 = vmatprep.subr.bf16.mxu0 0
  %2343 = vmatpush1.bf16.msra.mxu0 %v2314
  %2344 = vmatprep.subr.bf16.mxu0 0
  %2345 = vmatpush1.bf16.msra.mxu0 0
  %2346 = vmatprep.subr.bf16.mxu0 0
  %2347 = vmatpush1.bf16.msra.mxu0 0
  %2348 = vmatprep.subr.bf16.mxu0 0
  %2349 = vmatpush1.bf16.msra.mxu0 0
  %2350 = vmatprep.subr.bf16.mxu0 0
  %2351 = vmatpush1.bf16.msra.mxu0 0
  %2352 = vmatprep.subr.bf16.mxu0 0
  %2353 = vmatpush1.bf16.msra.mxu0 0
  %2354 = vmatprep.subr.bf16.mxu0 0
  %2355 = vmatpush1.bf16.msra.mxu0 0
  %2356 = vmatprep.mubr.bf16.mxu0 %v2322
  %2357 = vmatmul.mubr.bf16.gmra.mrb[0].mxu0 %v2318
  %v2358 = vpop.f32.mrb[0].mxu0
  %v2359 = vadd.f32 0.0, %v2358
  %v2360 = vpop.f32.mrb[0].mxu0
  %v2361 = vpop.f32.mrb[0].mxu0
  %v2362 = vpop.f32.mrb[0].mxu0
  %2363 = vdwg.mxu0
  %v2364 = vxor.u32 %v2359, 2147483648
  %v2365 = vmul.f32 %v2364, 1.442695
  %v2366 = vpow.pop %v2365
  %v2367 = vadd.f32 %v2366, 1.0
  %v2368 = vrcp.pop %v2367
  %v2369 = vmul.f32 1.0, %v2368
  %2370 = vst [vmem:[%s11] sm:$0xff] %v2369
  // Predicated region
  $region46: #{pos3d_discriminator.1} parent=0 // pred_check
    _
  $region47: #{pos3d_discriminator.1} parent=0 // pred_check_branch
    %2372 = sbr.rel (0) target = $region49
  $region48: #{pos3d_discriminator.1} parent=0 // pred_region
    _
  $region49: #{pos3d_discriminator.1} parent=0 // pred_fallthru
    _
  // Predicated region
  $region50: #{pos3d_discriminator.1} parent=0 // pred_check
    _
  $region51: #{pos3d_discriminator.1} parent=0 // pred_check_branch
    %2374 = sbr.rel (0) target = $region53
  $region52: #{pos3d_discriminator.1} parent=0 // pred_region
    _
  $region53: #{pos3d_discriminator.1} parent=0 // pred_fallthru
    _

</llo_original>
